<compile_context>
chip_gen: v7x
topology: tpu7x:2x2x1
jax: 0.10.0
libtpu: 0.0.40
codegen_flags: <defaults>
</compile_context>

<pallas_src>
import jax
import jax.numpy as jnp
import numpy as np
from jax.experimental import pallas as pl
from jax.experimental.pallas import tpu as pltpu

HIDDEN = 16
N_HIDDEN_LAYERS = 10  # first layer (see TODO above) + 9 middle layers, each followed by ReLU


def activation_net_kernel(x_ref, gslab_ref, mlw_ref, tail_ref, o_ref):
    T = x_ref.shape[0]
    B = x_ref.shape[1]
    H = HIDDEN

    # Packed GRU slab layout (rows):
    #   0:16   -> [W_hr | W_hz | W_hn]            (16, 48)
    #   16     -> [W_ir | W_iz | W_in]            (1, 48)   (input size = 1)
    #   17     -> [b_ir+b_hr | b_iz+b_hz | b_in]  (1, 48)
    #   18     -> [0 | 0 | b_hn]                  (1, 48)   (b_hn stays inside r*(...))
    w_rec = gslab_ref[0:H, :]                # (16, 48)
    w_in = gslab_ref[H:H + 1, :]             # (1, 48)
    b_pre = gslab_ref[H + 1:H + 2, :]        # (1, 48)
    b_rec = gslab_ref[H + 2:H + 3, :]        # (1, 48)

    # Hoisted input projections: one vectorized VPU pre-pass, off the serial critical path.
    gates_x = x_ref[...] * w_in + b_pre      # (T, B, 48)

    h = jnp.zeros((B, H), jnp.float32)
    # Fully unrolled recurrence: one fused MXU matmul + one fused sigmoid per step.
    for t in range(T):
        gx = gates_x[t]                                                   # (B, 48)
        hh = jnp.dot(h, w_rec, preferred_element_type=jnp.float32) + b_rec  # (B, 48)
        rz = jax.nn.sigmoid(gx[:, 0:2 * H] + hh[:, 0:2 * H])              # (B, 32)
        r = rz[:, 0:H]
        z = rz[:, H:2 * H]
        n = jnp.tanh(gx[:, 2 * H:3 * H] + r * hh[:, 2 * H:3 * H])
        h = (1.0 - z) * n + z * h

    # MLP stack: 10x (Linear 16->16 + ReLU). Biases live in rows 0..9 of the tail slab.
    for k in range(N_HIDDEN_LAYERS):
        h = jnp.maximum(
            jnp.dot(h, mlw_ref[k], preferred_element_type=jnp.float32)
            + tail_ref[k:k + 1, :],
            0.0)

    # Final Linear 16->1 as VPU multiply + lane reduction (avoids an N=1 MXU round-trip).
    wout = tail_ref[N_HIDDEN_LAYERS:N_HIDDEN_LAYERS + 1, :]               # (1, 16)
    bout = tail_ref[N_HIDDEN_LAYERS + 1:N_HIDDEN_LAYERS + 2, 0:1]         # (1, 1)
    o_ref[...] = jnp.sum(h * wout, axis=-1, keepdims=True) + bout


def pack_params(p):
    """Pack the 15 small parameter arrays into 3 contiguous slabs (fewer HBM->VMEM DMAs)."""
    gslab = jnp.concatenate([
        jnp.concatenate([p["whr"], p["whz"], p["whn"]], axis=1),                      # (16,48)
        jnp.concatenate([p["wir"], p["wiz"], p["win"]], axis=1),                      # (1,48)
        jnp.concatenate([p["br"], p["bz"], p["bni"]], axis=1),                        # (1,48)
        jnp.concatenate([jnp.zeros((1, 2 * HIDDEN), jnp.float32), p["bnh"]], axis=1),  # (1,48)
    ], axis=0)                                                                         # (19,48)
    tail = jnp.concatenate([
        p["mlb"].reshape(N_HIDDEN_LAYERS, HIDDEN),                                     # (10,16)
        p["wout"].T,                                                                   # (1,16)
        jnp.pad(p["bout"], ((0, 0), (0, HIDDEN - 1))),                                 # (1,16)
    ], axis=0)                                                                         # (12,16)
    return dict(gslab=gslab, mlw=p["mlw"], tail=tail)


def activation_net_forward(x, packed, b_tile=256):
    """x: (batch, time, 1) float32 -> (batch, 1) float32."""
    B, T, _ = x.shape
    # Batch tile: multiple of 8 sublanes; weights stay resident across the batch grid.
    bt = min(b_tile, max(8, B))
    bt = max(8, (bt // 8) * 8)
    Bp = int(np.ceil(B / bt) * bt)
    if Bp != B:
        x = jnp.pad(x, ((0, Bp - B), (0, 0), (0, 0)))
    x_tb = jnp.transpose(x, (1, 0, 2))  # (T, Bp, 1) for leading-axis time indexing in-kernel

    out = pl.pallas_call(
        activation_net_kernel,
        out_shape=jax.ShapeDtypeStruct((Bp, 1), jnp.float32),
        grid=(Bp // bt,),
        in_specs=[
            pl.BlockSpec((T, bt, 1), lambda b: (0, b, 0)),                          # x
            pl.BlockSpec((HIDDEN + 3, 3 * HIDDEN), lambda b: (0, 0)),               # GRU slab
            pl.BlockSpec((N_HIDDEN_LAYERS, HIDDEN, HIDDEN), lambda b: (0, 0, 0)),   # MLP weights
            pl.BlockSpec((N_HIDDEN_LAYERS + 2, HIDDEN), lambda b: (0, 0)),          # biases/head
        ],
        out_specs=pl.BlockSpec((bt, 1), lambda b: (b, 0)),
        compiler_params=pltpu.CompilerParams(
            dimension_semantics=("parallel",)),  # megacore sharding on v7x
    )(x_tb, packed["gslab"], packed["mlw"], packed["tail"])
    return out[:B]


def init_params(key):
    """Deterministic synthetic parameters matching the module's declared shapes."""
    ks = jax.random.split(key, 16)
    gru_bound = 1.0 / np.sqrt(HIDDEN)  # PyTorch GRU default: U(-1/sqrt(H), 1/sqrt(H))

    def u(k, shape, b):
        return jax.random.uniform(k, shape, jnp.float32, -b, b)

    params = dict(
        wir=u(ks[0], (1, HIDDEN), gru_bound),
        wiz=u(ks[1], (1, HIDDEN), gru_bound),
        win=u(ks[2], (1, HIDDEN), gru_bound),
        whr=u(ks[3], (HIDDEN, HIDDEN), gru_bound),
        whz=u(ks[4], (HIDDEN, HIDDEN), gru_bound),
        whn=u(ks[5], (HIDDEN, HIDDEN), gru_bound),
        br=u(ks[6], (1, HIDDEN), gru_bound) + u(ks[7], (1, HIDDEN), gru_bound),   # b_ir + b_hr
        bz=u(ks[8], (1, HIDDEN), gru_bound) + u(ks[9], (1, HIDDEN), gru_bound),   # b_iz + b_hz
        bni=u(ks[10], (1, HIDDEN), gru_bound),   # b_in
        bnh=u(ks[11], (1, HIDDEN), gru_bound),   # b_hn
    )
    # LinearNorm uses xavier_uniform for weights; nn.Linear default for biases.
    xav = np.sqrt(6.0 / (HIDDEN + HIDDEN))
    params["mlw"] = jax.random.uniform(
        ks[12], (N_HIDDEN_LAYERS, HIDDEN, HIDDEN), jnp.float32, -xav, xav)  # stored (in, out)
    params["mlb"] = jax.random.uniform(
        ks[13], (N_HIDDEN_LAYERS, 1, HIDDEN), jnp.float32, -gru_bound, gru_bound)
    xav_out = np.sqrt(6.0 / (HIDDEN + 1))
    params["wout"] = jax.random.uniform(ks[14], (HIDDEN, 1), jnp.float32, -xav_out, xav_out)
    params["bout"] = jax.random.uniform(ks[15], (1, 1), jnp.float32, -gru_bound, gru_bound)
    return params


def reference_forward(x, p):
    """Pure-JAX reference (unfused weights), for correctness checking."""
    B, T, _ = x.shape
    h = jnp.zeros((B, HIDDEN), jnp.float32)
    for t in range(T):
        xt = x[:, t, :]
        r = jax.nn.sigmoid(xt @ p["wir"] + h @ p["whr"] + p["br"])
        z = jax.nn.sigmoid(xt @ p["wiz"] + h @ p["whz"] + p["bz"])
        n = jnp.tanh(xt @ p["win"] + p["bni"] + r * (h @ p["whn"] + p["bnh"]))
        h = (1.0 - z) * n + z * h
    for k in range(N_HIDDEN_LAYERS):
        h = jax.nn.relu(h @ p["mlw"][k] + p["mlb"][k])
    return h @ p["wout"] + p["bout"]


if __name__ == "__main__":
    key = jax.random.PRNGKey(0)
    kx, kp = jax.random.split(key)
    B, T = 8, 8
    x = jax.random.normal(kx, (B, T, 1), jnp.float32)  # GRU input: (batch, time, feature=1)
    params = init_params(kp)
    packed = pack_params(params)

    out = activation_net_forward(x, packed)
    out = jax.block_until_ready(out)

    assert out.shape == (B, 1), out.shape
    ref = reference_forward(x, params)
    np.testing.assert_allclose(np.asarray(out), np.asarray(ref), rtol=1e-5, atol=1e-5)
    print("KERNEL_OK")
</pallas_src>

<mosaic_0001>
module attributes {stable_mosaic.version = 11 : i64} {
  func.func @activation_net_kernel(%arg0: i32, %arg1: memref<8x8x1xf32, #tpu.memory_space<vmem>>, %arg2: memref<19x48xf32, #tpu.memory_space<vmem>>, %arg3: memref<10x16x16xf32, #tpu.memory_space<vmem>>, %arg4: memref<12x16xf32, #tpu.memory_space<vmem>>, %arg5: memref<8x1xf32, #tpu.memory_space<vmem>>) attributes {dimension_semantics = [#tpu.dimension_semantics<parallel>], iteration_bounds = array<i64: 1>, scalar_prefetch = 0 : i64, scratch_operands = 0 : i64, tpu.core_type = #tpu.core_type<tc>, window_params = [{transform_indices = @transform_0, window_bounds = array<i64: 8, 8, 1>}, {pipeline_mode = #tpu.pipeline_mode<synchronous>, transform_indices = @transform_1, window_bounds = array<i64: 19, 48>}, {pipeline_mode = #tpu.pipeline_mode<synchronous>, transform_indices = @transform_2, window_bounds = array<i64: 10, 16, 16>}, {pipeline_mode = #tpu.pipeline_mode<synchronous>, transform_indices = @transform_3, window_bounds = array<i64: 12, 16>}, {transform_indices = @transform_4, window_bounds = array<i64: 8, 1>}]} {
    %c0 = arith.constant 0 : index
    %c0_0 = arith.constant 0 : index
    %0 = vector.load %arg2[%c0, %c0_0] : memref<19x48xf32, #tpu.memory_space<vmem>>, vector<16x48xf32>
    %c16 = arith.constant 16 : index
    %c0_1 = arith.constant 0 : index
    %1 = vector.load %arg2[%c16, %c0_1] : memref<19x48xf32, #tpu.memory_space<vmem>>, vector<1x48xf32>
    %c17 = arith.constant 17 : index
    %c0_2 = arith.constant 0 : index
    %2 = vector.load %arg2[%c17, %c0_2] : memref<19x48xf32, #tpu.memory_space<vmem>>, vector<1x48xf32>
    %c18 = arith.constant 18 : index
    %c0_3 = arith.constant 0 : index
    %3 = vector.load %arg2[%c18, %c0_3] : memref<19x48xf32, #tpu.memory_space<vmem>>, vector<1x48xf32>
    %c0_4 = arith.constant 0 : index
    %c0_5 = arith.constant 0 : index
    %c0_6 = arith.constant 0 : index
    %4 = vector.load %arg1[%c0_4, %c0_5, %c0_6] : memref<8x8x1xf32, #tpu.memory_space<vmem>>, vector<8x8x1xf32>
    %5 = vector.shape_cast %1 : vector<1x48xf32> to vector<1x1x48xf32>
    %6 = vector.broadcast %4 : vector<8x8x1xf32> to vector<8x8x48xf32>
    %7 = vector.broadcast %5 : vector<1x1x48xf32> to vector<8x8x48xf32>
    %8 = arith.mulf %6, %7 : vector<8x8x48xf32>
    %9 = vector.shape_cast %2 : vector<1x48xf32> to vector<1x1x48xf32>
    %10 = vector.broadcast %9 : vector<1x1x48xf32> to vector<8x8x48xf32>
    %11 = arith.addf %8, %10 : vector<8x8x48xf32>
    %cst = arith.constant 0.000000e+00 : f32
    %12 = vector.broadcast %cst : f32 to vector<8x16xf32>
    %13 = vector.extract_strided_slice %11 {offsets = [0, 0, 0], sizes = [1, 8, 48], strides = [1, 1, 1]} : vector<8x8x48xf32> to vector<1x8x48xf32>
    %14 = vector.shape_cast %13 : vector<1x8x48xf32> to vector<8x48xf32>
    %cst_7 = arith.constant dense<0.000000e+00> : vector<8x48xf32>
    %15 = tpu.matmul %12, %0, %cst_7 {dimension_numbers = #tpu.dot_dimension_numbers<[1], [0], [0], [1], [0, 0, 1, 1], [], []>} : vector<8x16xf32>, vector<16x48xf32>, vector<8x48xf32> -> vector<8x48xf32>
    %16 = vector.broadcast %3 : vector<1x48xf32> to vector<8x48xf32>
    %17 = arith.addf %15, %16 : vector<8x48xf32>
    %18 = vector.extract_strided_slice %14 {offsets = [0, 0], sizes = [8, 32], strides = [1, 1]} : vector<8x48xf32> to vector<8x32xf32>
    %19 = vector.extract_strided_slice %17 {offsets = [0, 0], sizes = [8, 32], strides = [1, 1]} : vector<8x48xf32> to vector<8x32xf32>
    %20 = arith.addf %18, %19 : vector<8x32xf32>
    %21 = arith.negf %20 : vector<8x32xf32>
    %22 = math.exp %21 : vector<8x32xf32>
    %cst_8 = arith.constant 1.000000e+00 : f32
    %23 = vector.broadcast %cst_8 : f32 to vector<8x32xf32>
    %24 = arith.addf %23, %22 : vector<8x32xf32>
    %25 = arith.divf %23, %24 : vector<8x32xf32>
    %26 = vector.extract_strided_slice %25 {offsets = [0, 0], sizes = [8, 16], strides = [1, 1]} : vector<8x32xf32> to vector<8x16xf32>
    %27 = vector.extract_strided_slice %25 {offsets = [0, 16], sizes = [8, 16], strides = [1, 1]} : vector<8x32xf32> to vector<8x16xf32>
    %28 = vector.extract_strided_slice %14 {offsets = [0, 32], sizes = [8, 16], strides = [1, 1]} : vector<8x48xf32> to vector<8x16xf32>
    %29 = vector.extract_strided_slice %17 {offsets = [0, 32], sizes = [8, 16], strides = [1, 1]} : vector<8x48xf32> to vector<8x16xf32>
    %30 = arith.mulf %26, %29 : vector<8x16xf32>
    %31 = arith.addf %28, %30 : vector<8x16xf32>
    %32 = math.tanh %31 : vector<8x16xf32>
    %cst_9 = arith.constant 1.000000e+00 : f32
    %33 = vector.broadcast %cst_9 : f32 to vector<8x16xf32>
    %34 = arith.subf %33, %27 : vector<8x16xf32>
    %35 = arith.mulf %34, %32 : vector<8x16xf32>
    %36 = arith.mulf %27, %12 : vector<8x16xf32>
    %37 = arith.addf %35, %36 : vector<8x16xf32>
    %38 = vector.extract_strided_slice %11 {offsets = [1, 0, 0], sizes = [1, 8, 48], strides = [1, 1, 1]} : vector<8x8x48xf32> to vector<1x8x48xf32>
    %39 = vector.shape_cast %38 : vector<1x8x48xf32> to vector<8x48xf32>
    %cst_10 = arith.constant dense<0.000000e+00> : vector<8x48xf32>
    %40 = tpu.matmul %37, %0, %cst_10 {dimension_numbers = #tpu.dot_dimension_numbers<[1], [0], [0], [1], [0, 0, 1, 1], [], []>} : vector<8x16xf32>, vector<16x48xf32>, vector<8x48xf32> -> vector<8x48xf32>
    %41 = vector.broadcast %3 : vector<1x48xf32> to vector<8x48xf32>
    %42 = arith.addf %40, %41 : vector<8x48xf32>
    %43 = vector.extract_strided_slice %39 {offsets = [0, 0], sizes = [8, 32], strides = [1, 1]} : vector<8x48xf32> to vector<8x32xf32>
    %44 = vector.extract_strided_slice %42 {offsets = [0, 0], sizes = [8, 32], strides = [1, 1]} : vector<8x48xf32> to vector<8x32xf32>
    %45 = arith.addf %43, %44 : vector<8x32xf32>
    %46 = arith.negf %45 : vector<8x32xf32>
    %47 = math.exp %46 : vector<8x32xf32>
    %cst_11 = arith.constant 1.000000e+00 : f32
    %48 = vector.broadcast %cst_11 : f32 to vector<8x32xf32>
    %49 = arith.addf %48, %47 : vector<8x32xf32>
    %50 = arith.divf %48, %49 : vector<8x32xf32>
    %51 = vector.extract_strided_slice %50 {offsets = [0, 0], sizes = [8, 16], strides = [1, 1]} : vector<8x32xf32> to vector<8x16xf32>
    %52 = vector.extract_strided_slice %50 {offsets = [0, 16], sizes = [8, 16], strides = [1, 1]} : vector<8x32xf32> to vector<8x16xf32>
    %53 = vector.extract_strided_slice %39 {offsets = [0, 32], sizes = [8, 16], strides = [1, 1]} : vector<8x48xf32> to vector<8x16xf32>
    %54 = vector.extract_strided_slice %42 {offsets = [0, 32], sizes = [8, 16], strides = [1, 1]} : vector<8x48xf32> to vector<8x16xf32>
    %55 = arith.mulf %51, %54 : vector<8x16xf32>
    %56 = arith.addf %53, %55 : vector<8x16xf32>
    %57 = math.tanh %56 : vector<8x16xf32>
    %cst_12 = arith.constant 1.000000e+00 : f32
    %58 = vector.broadcast %cst_12 : f32 to vector<8x16xf32>
    %59 = arith.subf %58, %52 : vector<8x16xf32>
    %60 = arith.mulf %59, %57 : vector<8x16xf32>
    %61 = arith.mulf %52, %37 : vector<8x16xf32>
    %62 = arith.addf %60, %61 : vector<8x16xf32>
    %63 = vector.extract_strided_slice %11 {offsets = [2, 0, 0], sizes = [1, 8, 48], strides = [1, 1, 1]} : vector<8x8x48xf32> to vector<1x8x48xf32>
    %64 = vector.shape_cast %63 : vector<1x8x48xf32> to vector<8x48xf32>
    %cst_13 = arith.constant dense<0.000000e+00> : vector<8x48xf32>
    %65 = tpu.matmul %62, %0, %cst_13 {dimension_numbers = #tpu.dot_dimension_numbers<[1], [0], [0], [1], [0, 0, 1, 1], [], []>} : vector<8x16xf32>, vector<16x48xf32>, vector<8x48xf32> -> vector<8x48xf32>
    %66 = vector.broadcast %3 : vector<1x48xf32> to vector<8x48xf32>
    %67 = arith.addf %65, %66 : vector<8x48xf32>
    %68 = vector.extract_strided_slice %64 {offsets = [0, 0], sizes = [8, 32], strides = [1, 1]} : vector<8x48xf32> to vector<8x32xf32>
    %69 = vector.extract_strided_slice %67 {offsets = [0, 0], sizes = [8, 32], strides = [1, 1]} : vector<8x48xf32> to vector<8x32xf32>
    %70 = arith.addf %68, %69 : vector<8x32xf32>
    %71 = arith.negf %70 : vector<8x32xf32>
    %72 = math.exp %71 : vector<8x32xf32>
    %cst_14 = arith.constant 1.000000e+00 : f32
    %73 = vector.broadcast %cst_14 : f32 to vector<8x32xf32>
    %74 = arith.addf %73, %72 : vector<8x32xf32>
    %75 = arith.divf %73, %74 : vector<8x32xf32>
    %76 = vector.extract_strided_slice %75 {offsets = [0, 0], sizes = [8, 16], strides = [1, 1]} : vector<8x32xf32> to vector<8x16xf32>
    %77 = vector.extract_strided_slice %75 {offsets = [0, 16], sizes = [8, 16], strides = [1, 1]} : vector<8x32xf32> to vector<8x16xf32>
    %78 = vector.extract_strided_slice %64 {offsets = [0, 32], sizes = [8, 16], strides = [1, 1]} : vector<8x48xf32> to vector<8x16xf32>
    %79 = vector.extract_strided_slice %67 {offsets = [0, 32], sizes = [8, 16], strides = [1, 1]} : vector<8x48xf32> to vector<8x16xf32>
    %80 = arith.mulf %76, %79 : vector<8x16xf32>
    %81 = arith.addf %78, %80 : vector<8x16xf32>
    %82 = math.tanh %81 : vector<8x16xf32>
    %cst_15 = arith.constant 1.000000e+00 : f32
    %83 = vector.broadcast %cst_15 : f32 to vector<8x16xf32>
    %84 = arith.subf %83, %77 : vector<8x16xf32>
    %85 = arith.mulf %84, %82 : vector<8x16xf32>
    %86 = arith.mulf %77, %62 : vector<8x16xf32>
    %87 = arith.addf %85, %86 : vector<8x16xf32>
    %88 = vector.extract_strided_slice %11 {offsets = [3, 0, 0], sizes = [1, 8, 48], strides = [1, 1, 1]} : vector<8x8x48xf32> to vector<1x8x48xf32>
    %89 = vector.shape_cast %88 : vector<1x8x48xf32> to vector<8x48xf32>
    %cst_16 = arith.constant dense<0.000000e+00> : vector<8x48xf32>
    %90 = tpu.matmul %87, %0, %cst_16 {dimension_numbers = #tpu.dot_dimension_numbers<[1], [0], [0], [1], [0, 0, 1, 1], [], []>} : vector<8x16xf32>, vector<16x48xf32>, vector<8x48xf32> -> vector<8x48xf32>
    %91 = vector.broadcast %3 : vector<1x48xf32> to vector<8x48xf32>
    %92 = arith.addf %90, %91 : vector<8x48xf32>
    %93 = vector.extract_strided_slice %89 {offsets = [0, 0], sizes = [8, 32], strides = [1, 1]} : vector<8x48xf32> to vector<8x32xf32>
    %94 = vector.extract_strided_slice %92 {offsets = [0, 0], sizes = [8, 32], strides = [1, 1]} : vector<8x48xf32> to vector<8x32xf32>
    %95 = arith.addf %93, %94 : vector<8x32xf32>
    %96 = arith.negf %95 : vector<8x32xf32>
    %97 = math.exp %96 : vector<8x32xf32>
    %cst_17 = arith.constant 1.000000e+00 : f32
    %98 = vector.broadcast %cst_17 : f32 to vector<8x32xf32>
    %99 = arith.addf %98, %97 : vector<8x32xf32>
    %100 = arith.divf %98, %99 : vector<8x32xf32>
    %101 = vector.extract_strided_slice %100 {offsets = [0, 0], sizes = [8, 16], strides = [1, 1]} : vector<8x32xf32> to vector<8x16xf32>
    %102 = vector.extract_strided_slice %100 {offsets = [0, 16], sizes = [8, 16], strides = [1, 1]} : vector<8x32xf32> to vector<8x16xf32>
    %103 = vector.extract_strided_slice %89 {offsets = [0, 32], sizes = [8, 16], strides = [1, 1]} : vector<8x48xf32> to vector<8x16xf32>
    %104 = vector.extract_strided_slice %92 {offsets = [0, 32], sizes = [8, 16], strides = [1, 1]} : vector<8x48xf32> to vector<8x16xf32>
    %105 = arith.mulf %101, %104 : vector<8x16xf32>
    %106 = arith.addf %103, %105 : vector<8x16xf32>
    %107 = math.tanh %106 : vector<8x16xf32>
    %cst_18 = arith.constant 1.000000e+00 : f32
    %108 = vector.broadcast %cst_18 : f32 to vector<8x16xf32>
    %109 = arith.subf %108, %102 : vector<8x16xf32>
    %110 = arith.mulf %109, %107 : vector<8x16xf32>
    %111 = arith.mulf %102, %87 : vector<8x16xf32>
    %112 = arith.addf %110, %111 : vector<8x16xf32>
    %113 = vector.extract_strided_slice %11 {offsets = [4, 0, 0], sizes = [1, 8, 48], strides = [1, 1, 1]} : vector<8x8x48xf32> to vector<1x8x48xf32>
    %114 = vector.shape_cast %113 : vector<1x8x48xf32> to vector<8x48xf32>
    %cst_19 = arith.constant dense<0.000000e+00> : vector<8x48xf32>
    %115 = tpu.matmul %112, %0, %cst_19 {dimension_numbers = #tpu.dot_dimension_numbers<[1], [0], [0], [1], [0, 0, 1, 1], [], []>} : vector<8x16xf32>, vector<16x48xf32>, vector<8x48xf32> -> vector<8x48xf32>
    %116 = vector.broadcast %3 : vector<1x48xf32> to vector<8x48xf32>
    %117 = arith.addf %115, %116 : vector<8x48xf32>
    %118 = vector.extract_strided_slice %114 {offsets = [0, 0], sizes = [8, 32], strides = [1, 1]} : vector<8x48xf32> to vector<8x32xf32>
    %119 = vector.extract_strided_slice %117 {offsets = [0, 0], sizes = [8, 32], strides = [1, 1]} : vector<8x48xf32> to vector<8x32xf32>
    %120 = arith.addf %118, %119 : vector<8x32xf32>
    %121 = arith.negf %120 : vector<8x32xf32>
    %122 = math.exp %121 : vector<8x32xf32>
    %cst_20 = arith.constant 1.000000e+00 : f32
    %123 = vector.broadcast %cst_20 : f32 to vector<8x32xf32>
    %124 = arith.addf %123, %122 : vector<8x32xf32>
    %125 = arith.divf %123, %124 : vector<8x32xf32>
    %126 = vector.extract_strided_slice %125 {offsets = [0, 0], sizes = [8, 16], strides = [1, 1]} : vector<8x32xf32> to vector<8x16xf32>
    %127 = vector.extract_strided_slice %125 {offsets = [0, 16], sizes = [8, 16], strides = [1, 1]} : vector<8x32xf32> to vector<8x16xf32>
    %128 = vector.extract_strided_slice %114 {offsets = [0, 32], sizes = [8, 16], strides = [1, 1]} : vector<8x48xf32> to vector<8x16xf32>
    %129 = vector.extract_strided_slice %117 {offsets = [0, 32], sizes = [8, 16], strides = [1, 1]} : vector<8x48xf32> to vector<8x16xf32>
    %130 = arith.mulf %126, %129 : vector<8x16xf32>
    %131 = arith.addf %128, %130 : vector<8x16xf32>
    %132 = math.tanh %131 : vector<8x16xf32>
    %cst_21 = arith.constant 1.000000e+00 : f32
    %133 = vector.broadcast %cst_21 : f32 to vector<8x16xf32>
    %134 = arith.subf %133, %127 : vector<8x16xf32>
    %135 = arith.mulf %134, %132 : vector<8x16xf32>
    %136 = arith.mulf %127, %112 : vector<8x16xf32>
    %137 = arith.addf %135, %136 : vector<8x16xf32>
    %138 = vector.extract_strided_slice %11 {offsets = [5, 0, 0], sizes = [1, 8, 48], strides = [1, 1, 1]} : vector<8x8x48xf32> to vector<1x8x48xf32>
    %139 = vector.shape_cast %138 : vector<1x8x48xf32> to vector<8x48xf32>
    %cst_22 = arith.constant dense<0.000000e+00> : vector<8x48xf32>
    %140 = tpu.matmul %137, %0, %cst_22 {dimension_numbers = #tpu.dot_dimension_numbers<[1], [0], [0], [1], [0, 0, 1, 1], [], []>} : vector<8x16xf32>, vector<16x48xf32>, vector<8x48xf32> -> vector<8x48xf32>
    %141 = vector.broadcast %3 : vector<1x48xf32> to vector<8x48xf32>
    %142 = arith.addf %140, %141 : vector<8x48xf32>
    %143 = vector.extract_strided_slice %139 {offsets = [0, 0], sizes = [8, 32], strides = [1, 1]} : vector<8x48xf32> to vector<8x32xf32>
    %144 = vector.extract_strided_slice %142 {offsets = [0, 0], sizes = [8, 32], strides = [1, 1]} : vector<8x48xf32> to vector<8x32xf32>
    %145 = arith.addf %143, %144 : vector<8x32xf32>
    %146 = arith.negf %145 : vector<8x32xf32>
    %147 = math.exp %146 : vector<8x32xf32>
    %cst_23 = arith.constant 1.000000e+00 : f32
    %148 = vector.broadcast %cst_23 : f32 to vector<8x32xf32>
    %149 = arith.addf %148, %147 : vector<8x32xf32>
    %150 = arith.divf %148, %149 : vector<8x32xf32>
    %151 = vector.extract_strided_slice %150 {offsets = [0, 0], sizes = [8, 16], strides = [1, 1]} : vector<8x32xf32> to vector<8x16xf32>
    %152 = vector.extract_strided_slice %150 {offsets = [0, 16], sizes = [8, 16], strides = [1, 1]} : vector<8x32xf32> to vector<8x16xf32>
    %153 = vector.extract_strided_slice %139 {offsets = [0, 32], sizes = [8, 16], strides = [1, 1]} : vector<8x48xf32> to vector<8x16xf32>
    %154 = vector.extract_strided_slice %142 {offsets = [0, 32], sizes = [8, 16], strides = [1, 1]} : vector<8x48xf32> to vector<8x16xf32>
    %155 = arith.mulf %151, %154 : vector<8x16xf32>
    %156 = arith.addf %153, %155 : vector<8x16xf32>
    %157 = math.tanh %156 : vector<8x16xf32>
    %cst_24 = arith.constant 1.000000e+00 : f32
    %158 = vector.broadcast %cst_24 : f32 to vector<8x16xf32>
    %159 = arith.subf %158, %152 : vector<8x16xf32>
    %160 = arith.mulf %159, %157 : vector<8x16xf32>
    %161 = arith.mulf %152, %137 : vector<8x16xf32>
    %162 = arith.addf %160, %161 : vector<8x16xf32>
    %163 = vector.extract_strided_slice %11 {offsets = [6, 0, 0], sizes = [1, 8, 48], strides = [1, 1, 1]} : vector<8x8x48xf32> to vector<1x8x48xf32>
    %164 = vector.shape_cast %163 : vector<1x8x48xf32> to vector<8x48xf32>
    %cst_25 = arith.constant dense<0.000000e+00> : vector<8x48xf32>
    %165 = tpu.matmul %162, %0, %cst_25 {dimension_numbers = #tpu.dot_dimension_numbers<[1], [0], [0], [1], [0, 0, 1, 1], [], []>} : vector<8x16xf32>, vector<16x48xf32>, vector<8x48xf32> -> vector<8x48xf32>
    %166 = vector.broadcast %3 : vector<1x48xf32> to vector<8x48xf32>
    %167 = arith.addf %165, %166 : vector<8x48xf32>
    %168 = vector.extract_strided_slice %164 {offsets = [0, 0], sizes = [8, 32], strides = [1, 1]} : vector<8x48xf32> to vector<8x32xf32>
    %169 = vector.extract_strided_slice %167 {offsets = [0, 0], sizes = [8, 32], strides = [1, 1]} : vector<8x48xf32> to vector<8x32xf32>
    %170 = arith.addf %168, %169 : vector<8x32xf32>
    %171 = arith.negf %170 : vector<8x32xf32>
    %172 = math.exp %171 : vector<8x32xf32>
    %cst_26 = arith.constant 1.000000e+00 : f32
    %173 = vector.broadcast %cst_26 : f32 to vector<8x32xf32>
    %174 = arith.addf %173, %172 : vector<8x32xf32>
    %175 = arith.divf %173, %174 : vector<8x32xf32>
    %176 = vector.extract_strided_slice %175 {offsets = [0, 0], sizes = [8, 16], strides = [1, 1]} : vector<8x32xf32> to vector<8x16xf32>
    %177 = vector.extract_strided_slice %175 {offsets = [0, 16], sizes = [8, 16], strides = [1, 1]} : vector<8x32xf32> to vector<8x16xf32>
    %178 = vector.extract_strided_slice %164 {offsets = [0, 32], sizes = [8, 16], strides = [1, 1]} : vector<8x48xf32> to vector<8x16xf32>
    %179 = vector.extract_strided_slice %167 {offsets = [0, 32], sizes = [8, 16], strides = [1, 1]} : vector<8x48xf32> to vector<8x16xf32>
    %180 = arith.mulf %176, %179 : vector<8x16xf32>
    %181 = arith.addf %178, %180 : vector<8x16xf32>
    %182 = math.tanh %181 : vector<8x16xf32>
    %cst_27 = arith.constant 1.000000e+00 : f32
    %183 = vector.broadcast %cst_27 : f32 to vector<8x16xf32>
    %184 = arith.subf %183, %177 : vector<8x16xf32>
    %185 = arith.mulf %184, %182 : vector<8x16xf32>
    %186 = arith.mulf %177, %162 : vector<8x16xf32>
    %187 = arith.addf %185, %186 : vector<8x16xf32>
    %188 = vector.extract_strided_slice %11 {offsets = [7, 0, 0], sizes = [1, 8, 48], strides = [1, 1, 1]} : vector<8x8x48xf32> to vector<1x8x48xf32>
    %189 = vector.shape_cast %188 : vector<1x8x48xf32> to vector<8x48xf32>
    %cst_28 = arith.constant dense<0.000000e+00> : vector<8x48xf32>
    %190 = tpu.matmul %187, %0, %cst_28 {dimension_numbers = #tpu.dot_dimension_numbers<[1], [0], [0], [1], [0, 0, 1, 1], [], []>} : vector<8x16xf32>, vector<16x48xf32>, vector<8x48xf32> -> vector<8x48xf32>
    %191 = vector.broadcast %3 : vector<1x48xf32> to vector<8x48xf32>
    %192 = arith.addf %190, %191 : vector<8x48xf32>
    %193 = vector.extract_strided_slice %189 {offsets = [0, 0], sizes = [8, 32], strides = [1, 1]} : vector<8x48xf32> to vector<8x32xf32>
    %194 = vector.extract_strided_slice %192 {offsets = [0, 0], sizes = [8, 32], strides = [1, 1]} : vector<8x48xf32> to vector<8x32xf32>
    %195 = arith.addf %193, %194 : vector<8x32xf32>
    %196 = arith.negf %195 : vector<8x32xf32>
    %197 = math.exp %196 : vector<8x32xf32>
    %cst_29 = arith.constant 1.000000e+00 : f32
    %198 = vector.broadcast %cst_29 : f32 to vector<8x32xf32>
    %199 = arith.addf %198, %197 : vector<8x32xf32>
    %200 = arith.divf %198, %199 : vector<8x32xf32>
    %201 = vector.extract_strided_slice %200 {offsets = [0, 0], sizes = [8, 16], strides = [1, 1]} : vector<8x32xf32> to vector<8x16xf32>
    %202 = vector.extract_strided_slice %200 {offsets = [0, 16], sizes = [8, 16], strides = [1, 1]} : vector<8x32xf32> to vector<8x16xf32>
    %203 = vector.extract_strided_slice %189 {offsets = [0, 32], sizes = [8, 16], strides = [1, 1]} : vector<8x48xf32> to vector<8x16xf32>
    %204 = vector.extract_strided_slice %192 {offsets = [0, 32], sizes = [8, 16], strides = [1, 1]} : vector<8x48xf32> to vector<8x16xf32>
    %205 = arith.mulf %201, %204 : vector<8x16xf32>
    %206 = arith.addf %203, %205 : vector<8x16xf32>
    %207 = math.tanh %206 : vector<8x16xf32>
    %cst_30 = arith.constant 1.000000e+00 : f32
    %208 = vector.broadcast %cst_30 : f32 to vector<8x16xf32>
    %209 = arith.subf %208, %202 : vector<8x16xf32>
    %210 = arith.mulf %209, %207 : vector<8x16xf32>
    %211 = arith.mulf %202, %187 : vector<8x16xf32>
    %212 = arith.addf %210, %211 : vector<8x16xf32>
    %c0_31 = arith.constant 0 : index
    %c0_32 = arith.constant 0 : index
    %c0_33 = arith.constant 0 : index
    %213 = vector.load %arg3[%c0_31, %c0_32, %c0_33] : memref<10x16x16xf32, #tpu.memory_space<vmem>>, vector<1x16x16xf32>
    %214 = vector.shape_cast %213 : vector<1x16x16xf32> to vector<16x16xf32>
    %cst_34 = arith.constant dense<0.000000e+00> : vector<8x16xf32>
    %215 = tpu.matmul %212, %214, %cst_34 {dimension_numbers = #tpu.dot_dimension_numbers<[1], [0], [0], [1], [0, 0, 1, 1], [], []>} : vector<8x16xf32>, vector<16x16xf32>, vector<8x16xf32> -> vector<8x16xf32>
    %c0_35 = arith.constant 0 : index
    %c0_36 = arith.constant 0 : index
    %216 = vector.load %arg4[%c0_35, %c0_36] : memref<12x16xf32, #tpu.memory_space<vmem>>, vector<1x16xf32>
    %217 = vector.broadcast %216 : vector<1x16xf32> to vector<8x16xf32>
    %218 = arith.addf %215, %217 : vector<8x16xf32>
    %cst_37 = arith.constant 0.000000e+00 : f32
    %219 = vector.broadcast %cst_37 : f32 to vector<8x16xf32>
    %220 = arith.maximumf %218, %219 : vector<8x16xf32>
    %c1 = arith.constant 1 : index
    %c0_38 = arith.constant 0 : index
    %c0_39 = arith.constant 0 : index
    %221 = vector.load %arg3[%c1, %c0_38, %c0_39] : memref<10x16x16xf32, #tpu.memory_space<vmem>>, vector<1x16x16xf32>
    %222 = vector.shape_cast %221 : vector<1x16x16xf32> to vector<16x16xf32>
    %cst_40 = arith.constant dense<0.000000e+00> : vector<8x16xf32>
    %223 = tpu.matmul %220, %222, %cst_40 {dimension_numbers = #tpu.dot_dimension_numbers<[1], [0], [0], [1], [0, 0, 1, 1], [], []>} : vector<8x16xf32>, vector<16x16xf32>, vector<8x16xf32> -> vector<8x16xf32>
    %c1_41 = arith.constant 1 : index
    %c0_42 = arith.constant 0 : index
    %224 = vector.load %arg4[%c1_41, %c0_42] : memref<12x16xf32, #tpu.memory_space<vmem>>, vector<1x16xf32>
    %225 = vector.broadcast %224 : vector<1x16xf32> to vector<8x16xf32>
    %226 = arith.addf %223, %225 : vector<8x16xf32>
    %cst_43 = arith.constant 0.000000e+00 : f32
    %227 = vector.broadcast %cst_43 : f32 to vector<8x16xf32>
    %228 = arith.maximumf %226, %227 : vector<8x16xf32>
    %c2 = arith.constant 2 : index
    %c0_44 = arith.constant 0 : index
    %c0_45 = arith.constant 0 : index
    %229 = vector.load %arg3[%c2, %c0_44, %c0_45] : memref<10x16x16xf32, #tpu.memory_space<vmem>>, vector<1x16x16xf32>
    %230 = vector.shape_cast %229 : vector<1x16x16xf32> to vector<16x16xf32>
    %cst_46 = arith.constant dense<0.000000e+00> : vector<8x16xf32>
    %231 = tpu.matmul %228, %230, %cst_46 {dimension_numbers = #tpu.dot_dimension_numbers<[1], [0], [0], [1], [0, 0, 1, 1], [], []>} : vector<8x16xf32>, vector<16x16xf32>, vector<8x16xf32> -> vector<8x16xf32>
    %c2_47 = arith.constant 2 : index
    %c0_48 = arith.constant 0 : index
    %232 = vector.load %arg4[%c2_47, %c0_48] : memref<12x16xf32, #tpu.memory_space<vmem>>, vector<1x16xf32>
    %233 = vector.broadcast %232 : vector<1x16xf32> to vector<8x16xf32>
    %234 = arith.addf %231, %233 : vector<8x16xf32>
    %cst_49 = arith.constant 0.000000e+00 : f32
    %235 = vector.broadcast %cst_49 : f32 to vector<8x16xf32>
    %236 = arith.maximumf %234, %235 : vector<8x16xf32>
    %c3 = arith.constant 3 : index
    %c0_50 = arith.constant 0 : index
    %c0_51 = arith.constant 0 : index
    %237 = vector.load %arg3[%c3, %c0_50, %c0_51] : memref<10x16x16xf32, #tpu.memory_space<vmem>>, vector<1x16x16xf32>
    %238 = vector.shape_cast %237 : vector<1x16x16xf32> to vector<16x16xf32>
    %cst_52 = arith.constant dense<0.000000e+00> : vector<8x16xf32>
    %239 = tpu.matmul %236, %238, %cst_52 {dimension_numbers = #tpu.dot_dimension_numbers<[1], [0], [0], [1], [0, 0, 1, 1], [], []>} : vector<8x16xf32>, vector<16x16xf32>, vector<8x16xf32> -> vector<8x16xf32>
    %c3_53 = arith.constant 3 : index
    %c0_54 = arith.constant 0 : index
    %240 = vector.load %arg4[%c3_53, %c0_54] : memref<12x16xf32, #tpu.memory_space<vmem>>, vector<1x16xf32>
    %241 = vector.broadcast %240 : vector<1x16xf32> to vector<8x16xf32>
    %242 = arith.addf %239, %241 : vector<8x16xf32>
    %cst_55 = arith.constant 0.000000e+00 : f32
    %243 = vector.broadcast %cst_55 : f32 to vector<8x16xf32>
    %244 = arith.maximumf %242, %243 : vector<8x16xf32>
    %c4 = arith.constant 4 : index
    %c0_56 = arith.constant 0 : index
    %c0_57 = arith.constant 0 : index
    %245 = vector.load %arg3[%c4, %c0_56, %c0_57] : memref<10x16x16xf32, #tpu.memory_space<vmem>>, vector<1x16x16xf32>
    %246 = vector.shape_cast %245 : vector<1x16x16xf32> to vector<16x16xf32>
    %cst_58 = arith.constant dense<0.000000e+00> : vector<8x16xf32>
    %247 = tpu.matmul %244, %246, %cst_58 {dimension_numbers = #tpu.dot_dimension_numbers<[1], [0], [0], [1], [0, 0, 1, 1], [], []>} : vector<8x16xf32>, vector<16x16xf32>, vector<8x16xf32> -> vector<8x16xf32>
    %c4_59 = arith.constant 4 : index
    %c0_60 = arith.constant 0 : index
    %248 = vector.load %arg4[%c4_59, %c0_60] : memref<12x16xf32, #tpu.memory_space<vmem>>, vector<1x16xf32>
    %249 = vector.broadcast %248 : vector<1x16xf32> to vector<8x16xf32>
    %250 = arith.addf %247, %249 : vector<8x16xf32>
    %cst_61 = arith.constant 0.000000e+00 : f32
    %251 = vector.broadcast %cst_61 : f32 to vector<8x16xf32>
    %252 = arith.maximumf %250, %251 : vector<8x16xf32>
    %c5 = arith.constant 5 : index
    %c0_62 = arith.constant 0 : index
    %c0_63 = arith.constant 0 : index
    %253 = vector.load %arg3[%c5, %c0_62, %c0_63] : memref<10x16x16xf32, #tpu.memory_space<vmem>>, vector<1x16x16xf32>
    %254 = vector.shape_cast %253 : vector<1x16x16xf32> to vector<16x16xf32>
    %cst_64 = arith.constant dense<0.000000e+00> : vector<8x16xf32>
    %255 = tpu.matmul %252, %254, %cst_64 {dimension_numbers = #tpu.dot_dimension_numbers<[1], [0], [0], [1], [0, 0, 1, 1], [], []>} : vector<8x16xf32>, vector<16x16xf32>, vector<8x16xf32> -> vector<8x16xf32>
    %c5_65 = arith.constant 5 : index
    %c0_66 = arith.constant 0 : index
    %256 = vector.load %arg4[%c5_65, %c0_66] : memref<12x16xf32, #tpu.memory_space<vmem>>, vector<1x16xf32>
    %257 = vector.broadcast %256 : vector<1x16xf32> to vector<8x16xf32>
    %258 = arith.addf %255, %257 : vector<8x16xf32>
    %cst_67 = arith.constant 0.000000e+00 : f32
    %259 = vector.broadcast %cst_67 : f32 to vector<8x16xf32>
    %260 = arith.maximumf %258, %259 : vector<8x16xf32>
    %c6 = arith.constant 6 : index
    %c0_68 = arith.constant 0 : index
    %c0_69 = arith.constant 0 : index
    %261 = vector.load %arg3[%c6, %c0_68, %c0_69] : memref<10x16x16xf32, #tpu.memory_space<vmem>>, vector<1x16x16xf32>
    %262 = vector.shape_cast %261 : vector<1x16x16xf32> to vector<16x16xf32>
    %cst_70 = arith.constant dense<0.000000e+00> : vector<8x16xf32>
    %263 = tpu.matmul %260, %262, %cst_70 {dimension_numbers = #tpu.dot_dimension_numbers<[1], [0], [0], [1], [0, 0, 1, 1], [], []>} : vector<8x16xf32>, vector<16x16xf32>, vector<8x16xf32> -> vector<8x16xf32>
    %c6_71 = arith.constant 6 : index
    %c0_72 = arith.constant 0 : index
    %264 = vector.load %arg4[%c6_71, %c0_72] : memref<12x16xf32, #tpu.memory_space<vmem>>, vector<1x16xf32>
    %265 = vector.broadcast %264 : vector<1x16xf32> to vector<8x16xf32>
    %266 = arith.addf %263, %265 : vector<8x16xf32>
    %cst_73 = arith.constant 0.000000e+00 : f32
    %267 = vector.broadcast %cst_73 : f32 to vector<8x16xf32>
    %268 = arith.maximumf %266, %267 : vector<8x16xf32>
    %c7 = arith.constant 7 : index
    %c0_74 = arith.constant 0 : index
    %c0_75 = arith.constant 0 : index
    %269 = vector.load %arg3[%c7, %c0_74, %c0_75] : memref<10x16x16xf32, #tpu.memory_space<vmem>>, vector<1x16x16xf32>
    %270 = vector.shape_cast %269 : vector<1x16x16xf32> to vector<16x16xf32>
    %cst_76 = arith.constant dense<0.000000e+00> : vector<8x16xf32>
    %271 = tpu.matmul %268, %270, %cst_76 {dimension_numbers = #tpu.dot_dimension_numbers<[1], [0], [0], [1], [0, 0, 1, 1], [], []>} : vector<8x16xf32>, vector<16x16xf32>, vector<8x16xf32> -> vector<8x16xf32>
    %c7_77 = arith.constant 7 : index
    %c0_78 = arith.constant 0 : index
    %272 = vector.load %arg4[%c7_77, %c0_78] : memref<12x16xf32, #tpu.memory_space<vmem>>, vector<1x16xf32>
    %273 = vector.broadcast %272 : vector<1x16xf32> to vector<8x16xf32>
    %274 = arith.addf %271, %273 : vector<8x16xf32>
    %cst_79 = arith.constant 0.000000e+00 : f32
    %275 = vector.broadcast %cst_79 : f32 to vector<8x16xf32>
    %276 = arith.maximumf %274, %275 : vector<8x16xf32>
    %c8 = arith.constant 8 : index
    %c0_80 = arith.constant 0 : index
    %c0_81 = arith.constant 0 : index
    %277 = vector.load %arg3[%c8, %c0_80, %c0_81] : memref<10x16x16xf32, #tpu.memory_space<vmem>>, vector<1x16x16xf32>
    %278 = vector.shape_cast %277 : vector<1x16x16xf32> to vector<16x16xf32>
    %cst_82 = arith.constant dense<0.000000e+00> : vector<8x16xf32>
    %279 = tpu.matmul %276, %278, %cst_82 {dimension_numbers = #tpu.dot_dimension_numbers<[1], [0], [0], [1], [0, 0, 1, 1], [], []>} : vector<8x16xf32>, vector<16x16xf32>, vector<8x16xf32> -> vector<8x16xf32>
    %c8_83 = arith.constant 8 : index
    %c0_84 = arith.constant 0 : index
    %280 = vector.load %arg4[%c8_83, %c0_84] : memref<12x16xf32, #tpu.memory_space<vmem>>, vector<1x16xf32>
    %281 = vector.broadcast %280 : vector<1x16xf32> to vector<8x16xf32>
    %282 = arith.addf %279, %281 : vector<8x16xf32>
    %cst_85 = arith.constant 0.000000e+00 : f32
    %283 = vector.broadcast %cst_85 : f32 to vector<8x16xf32>
    %284 = arith.maximumf %282, %283 : vector<8x16xf32>
    %c9 = arith.constant 9 : index
    %c0_86 = arith.constant 0 : index
    %c0_87 = arith.constant 0 : index
    %285 = vector.load %arg3[%c9, %c0_86, %c0_87] : memref<10x16x16xf32, #tpu.memory_space<vmem>>, vector<1x16x16xf32>
    %286 = vector.shape_cast %285 : vector<1x16x16xf32> to vector<16x16xf32>
    %cst_88 = arith.constant dense<0.000000e+00> : vector<8x16xf32>
    %287 = tpu.matmul %284, %286, %cst_88 {dimension_numbers = #tpu.dot_dimension_numbers<[1], [0], [0], [1], [0, 0, 1, 1], [], []>} : vector<8x16xf32>, vector<16x16xf32>, vector<8x16xf32> -> vector<8x16xf32>
    %c9_89 = arith.constant 9 : index
    %c0_90 = arith.constant 0 : index
    %288 = vector.load %arg4[%c9_89, %c0_90] : memref<12x16xf32, #tpu.memory_space<vmem>>, vector<1x16xf32>
    %289 = vector.broadcast %288 : vector<1x16xf32> to vector<8x16xf32>
    %290 = arith.addf %287, %289 : vector<8x16xf32>
    %cst_91 = arith.constant 0.000000e+00 : f32
    %291 = vector.broadcast %cst_91 : f32 to vector<8x16xf32>
    %292 = arith.maximumf %290, %291 : vector<8x16xf32>
    %c10 = arith.constant 10 : index
    %c0_92 = arith.constant 0 : index
    %293 = vector.load %arg4[%c10, %c0_92] : memref<12x16xf32, #tpu.memory_space<vmem>>, vector<1x16xf32>
    %c11 = arith.constant 11 : index
    %c0_93 = arith.constant 0 : index
    %294 = vector.load %arg4[%c11, %c0_93] : memref<12x16xf32, #tpu.memory_space<vmem>>, vector<1x1xf32>
    %295 = vector.broadcast %293 : vector<1x16xf32> to vector<8x16xf32>
    %296 = arith.mulf %292, %295 : vector<8x16xf32>
    %cst_94 = arith.constant dense<0.000000e+00> : vector<8xf32>
    %297 = vector.multi_reduction <add>, %296, %cst_94 [1] : vector<8x16xf32> to vector<8xf32>
    %298 = vector.shape_cast %297 : vector<8xf32> to vector<8x1xf32>
    %299 = vector.broadcast %294 : vector<1x1xf32> to vector<8x1xf32>
    %300 = arith.addf %298, %299 : vector<8x1xf32>
    %c0_95 = arith.constant 0 : index
    %c0_96 = arith.constant 0 : index
    %301 = vector.load %arg5[%c0_95, %c0_96] : memref<8x1xf32, #tpu.memory_space<vmem>>, vector<8x1xf32>
    tpu.vector_store %arg5[%c0_95, %c0_96], %300 {strides = array<i32>} : memref<8x1xf32, #tpu.memory_space<vmem>>, vector<8x1xf32>,
    return
  }
  func.func @transform_0(%arg0: i32) -> (i32, i32, i32) {
    %c0_i32 = arith.constant 0 : i32
    %c0_i32_0 = arith.constant 0 : i32
    %c0_i32_1 = arith.constant 0 : i32
    return %c0_i32, %arg0, %c0_i32_0 : i32, i32, i32
  }
  func.func @transform_1(%arg0: i32) -> (i32, i32) {
    %c0_i32 = arith.constant 0 : i32
    %c0_i32_0 = arith.constant 0 : i32
    %c0_i32_1 = arith.constant 0 : i32
    return %c0_i32, %c0_i32_0 : i32, i32
  }
  func.func @transform_2(%arg0: i32) -> (i32, i32, i32) {
    %c0_i32 = arith.constant 0 : i32
    %c0_i32_0 = arith.constant 0 : i32
    %c0_i32_1 = arith.constant 0 : i32
    %c0_i32_2 = arith.constant 0 : i32
    return %c0_i32, %c0_i32_0, %c0_i32_1 : i32, i32, i32
  }
  func.func @transform_3(%arg0: i32) -> (i32, i32) {
    %c0_i32 = arith.constant 0 : i32
    %c0_i32_0 = arith.constant 0 : i32
    %c0_i32_1 = arith.constant 0 : i32
    return %c0_i32, %c0_i32_0 : i32, i32
  }
  func.func @transform_4(%arg0: i32) -> (i32, i32) {
    %c0_i32 = arith.constant 0 : i32
    %c0_i32_0 = arith.constant 0 : i32
    return %arg0, %c0_i32 : i32, i32
  }
}

</mosaic_0001>

<llo_original>
// kernel: tpu_custom_call.1
$region0: #{tpu_custom_call.1}
  #allocation0 [shape = 'u32[]', space=smem, size = 0x4, offset = 0x4, fixed_abs, tag = 'smem constant byte address 0x4 - core index']
  #allocation1 [shape = 'u32[144,128]{1,0:T(1,128)}', space=vmem, size = 0x12000, scoped, tag = 'internal scratch']
  %s0 = inlined_call_operand.vmem [shape: f32[8,8,1], index: 0, kind: input, shape index: {}]
  %s1 = inlined_call_operand.vmem [shape: f32[19,48], index: 1, kind: input, shape index: {}]
  %s2 = inlined_call_operand.hbm [shape: f32[10,16,16], index: 2, kind: input, shape index: {}]
  %s3 = inlined_call_operand.vmem [shape: f32[12,16], index: 3, kind: input, shape index: {}]
  %s4 = inlined_call_operand.vmem [shape: f32[8,1], index: 4, kind: output, shape index: {}]
  %s5 = sld [smem:[#allocation0]]
  $region30: #{tpu_custom_call.1} parent=0
    _
  %s7 = ssub.s32 1, %s5
  %s8 = scalar_select 0, %s7, %s5
  $region1: #{tpu_custom_call.1} parent=0
    #allocation2 [shape = 'u8[81920]{0}', space=vmem, size = 0x14000, scoped, tag = 'input window, operand 2, single buffered']
    #allocation3 [shape = 's32[1]{0}', space=sflag, size = 0x4, scoped, tag = 'scoped memory for tpu_custom_call.1']
    %9 = vsyncpa [#allocation3], 0
    // Predicated region
    $region2: #{tpu_custom_call.1} parent=1 // pred_check
      _
    $region3: #{tpu_custom_call.1} parent=1 // pred_check_branch
      %11 = sbr.rel (0) target = $region5
    $region4: #{tpu_custom_call.1} parent=1 // pred_region
      _
    $region5: #{tpu_custom_call.1} parent=1 // pred_fallthru
      _
    // Predicated region
    $region6: #{tpu_custom_call.1} parent=1 // pred_check
      _
    $region7: #{tpu_custom_call.1} parent=1 // pred_check_branch
      %13 = sbr.rel (0) target = $region9
    $region8: #{tpu_custom_call.1} parent=1 // pred_region
      _
    $region9: #{tpu_custom_call.1} parent=1 // pred_fallthru
      _
    // Predicated region
    $region10: #{tpu_custom_call.1} parent=1 // pred_check
      _
    $region11: #{tpu_custom_call.1} parent=1 // pred_check_branch
      %15 = sbr.rel (0) target = $region13
    $region12: #{tpu_custom_call.1} parent=1 // pred_region
      %s17 = ssub.s32 2560, 2560
      %18 = vsyncadd [#allocation3], %s17
      %s19 = sshll.u32 [#allocation2], 4
      %s20 = int_to_ptr.vmem [resolvable:$true] %s19
      %25 = dma.hbm_to_vmem [thread:$0]  %s2, 2560, %s20, [#allocation3], 128, 128, 8
    $region13: #{tpu_custom_call.1} parent=1 // pred_fallthru
      _
    // Predicated region
    $region14: #{tpu_custom_call.1} parent=1 // pred_check
      _
    $region15: #{tpu_custom_call.1} parent=1 // pred_check_branch
      %27 = sbr.rel (0) target = $region17
    $region16: #{tpu_custom_call.1} parent=1 // pred_region
      _
    $region17: #{tpu_custom_call.1} parent=1 // pred_fallthru
      _
    // Predicated region
    $region18: #{tpu_custom_call.1} parent=1 // pred_check
      _
    $region19: #{tpu_custom_call.1} parent=1 // pred_check_branch
      %29 = sbr.rel (0) target = $region21
    $region20: #{tpu_custom_call.1} parent=1 // pred_region
      %30 = dma.done [#allocation3], 2560
    $region21: #{tpu_custom_call.1} parent=1 // pred_fallthru
      _
    %v31 = vld [vmem:[%s1] sm:$0xff]
    %v32 = vld [vmem:[%s1 + $0x8] sm:$0xff]
    %v33 = vld [vmem:[%s1 + $0x10] sm:$0x1]
    %v34 = vld [vmem:[%s1 + $0x11] sm:$0x1]
    %v35 = vld [vmem:[%s1 + $0x12] sm:$0x1]
    %v36 = vld [vmem:[%s0] sm:$0xff]
    %v37 = vld [vmem:[%s0 + $0x8] sm:$0xff]
    %v38 = vld [vmem:[%s0 + $0x10] sm:$0xff]
    %v39 = vld [vmem:[%s0 + $0x18] sm:$0xff]
    %v40 = vld [vmem:[%s0 + $0x20] sm:$0xff]
    %v41 = vld [vmem:[%s0 + $0x28] sm:$0xff]
    %v42 = vld [vmem:[%s0 + $0x30] sm:$0xff]
    %v43 = vld [vmem:[%s0 + $0x38] sm:$0xff]
    %45 = vset.pattern.permute.xlu0 0
    %46 = vperm.xlu0 %45, %v36
    %v47 = vpop.permute.xlu0 %46
    %50 = vset.pattern.permute.xlu0 0
    %51 = vperm.xlu0 %50, %v37
    %v52 = vpop.permute.xlu0 %51
    %55 = vset.pattern.permute.xlu0 0
    %56 = vperm.xlu0 %55, %v38
    %v57 = vpop.permute.xlu0 %56
    %60 = vset.pattern.permute.xlu0 0
    %61 = vperm.xlu0 %60, %v39
    %v62 = vpop.permute.xlu0 %61
    %65 = vset.pattern.permute.xlu0 0
    %66 = vperm.xlu0 %65, %v40
    %v67 = vpop.permute.xlu0 %66
    %70 = vset.pattern.permute.xlu0 0
    %71 = vperm.xlu0 %70, %v41
    %v72 = vpop.permute.xlu0 %71
    %75 = vset.pattern.permute.xlu0 0
    %76 = vperm.xlu0 %75, %v42
    %v77 = vpop.permute.xlu0 %76
    %80 = vset.pattern.permute.xlu0 0
    %81 = vperm.xlu0 %80, %v43
    %v82 = vpop.permute.xlu0 %81
    %v84 = vlaneseq
    %v85 = vshrl.u32 %v84, 7
    %v86 = vsub.s32 0, %v85
    %v87 = vrot.slane %v33, %v86
    %v88 = vmul.f32 %v47, %v87
    %v89 = vmul.f32 %v52, %v87
    %v90 = vmul.f32 %v57, %v87
    %v91 = vmul.f32 %v62, %v87
    %v92 = vmul.f32 %v67, %v87
    %v93 = vmul.f32 %v72, %v87
    %v94 = vmul.f32 %v77, %v87
    %v95 = vmul.f32 %v82, %v87
    %v96 = vlaneseq
    %v97 = vshrl.u32 %v96, 7
    %v98 = vsub.s32 0, %v97
    %v99 = vrot.slane %v34, %v98
    %v100 = vadd.f32 %v88, %v99
    %v101 = vadd.f32 %v89, %v99
    %v102 = vadd.f32 %v90, %v99
    %v103 = vadd.f32 %v91, %v99
    %v104 = vadd.f32 %v92, %v99
    %v105 = vadd.f32 %v93, %v99
    %v106 = vadd.f32 %v94, %v99
    %v107 = vadd.f32 %v95, %v99
    %v108 = vlaneseq
    %v109 = vshrl.u32 %v108, 7
    %v110 = vsub.s32 0, %v109
    %v111 = vrot.slane %v35, %v110
    %vm112 = vcmask 130048
    %v114 = vsel %vm112, 0.0, 0
    %116 = vmatprep.subr.mxu0 0.0
    %117 = vmatpush1.msra.mxu0 %v31
    %118 = vmatprep.subr.mxu0 0.0
    %119 = vmatpush1.msra.mxu0 %v32
    %120 = vmatprep.subr.mxu0 0.0
    %121 = vmatpush1.msra.mxu0 0.0
    %122 = vmatprep.subr.mxu0 0.0
    %123 = vmatpush1.msra.mxu0 0.0
    %124 = vmatprep.subr.mxu0 0.0
    %125 = vmatpush1.msra.mxu0 0.0
    %126 = vmatprep.subr.mxu0 0.0
    %127 = vmatpush1.msra.mxu0 0.0
    %128 = vmatprep.subr.mxu0 0.0
    %129 = vmatpush1.msra.mxu0 0.0
    %130 = vmatprep.subr.mxu0 0.0
    %131 = vmatpush1.msra.mxu0 0.0
    %132 = vmatprep.subr.mxu0 0.0
    %133 = vmatpush1.msra.mxu0 0.0
    %134 = vmatprep.subr.mxu0 0.0
    %135 = vmatpush1.msra.mxu0 0.0
    %136 = vmatprep.subr.mxu0 0.0
    %137 = vmatpush1.msra.mxu0 0.0
    %138 = vmatprep.subr.mxu0 0.0
    %139 = vmatpush1.msra.mxu0 0.0
    %140 = vmatprep.subr.mxu0 0.0
    %141 = vmatpush1.msra.mxu0 0.0
    %142 = vmatprep.subr.mxu0 0.0
    %143 = vmatpush1.msra.mxu0 0.0
    %144 = vmatprep.subr.mxu0 0.0
    %145 = vmatpush1.msra.mxu0 0.0
    %146 = vmatprep.subr.mxu0 0.0
    %147 = vmatpush1.msra.mxu0 0.0
    %148 = vmatprep.subr.mxu0 0.0
    %149 = vmatpush1.msra.mxu0 0.0
    %150 = vmatprep.subr.mxu0 0.0
    %151 = vmatpush1.msra.mxu0 0.0
    %152 = vmatprep.subr.mxu0 0.0
    %153 = vmatpush1.msra.mxu0 0.0
    %154 = vmatprep.subr.mxu0 0.0
    %155 = vmatpush1.msra.mxu0 0.0
    %156 = vmatprep.subr.mxu0 0.0
    %157 = vmatpush1.msra.mxu0 0.0
    %158 = vmatprep.subr.mxu0 0.0
    %159 = vmatpush1.msra.mxu0 0.0
    %160 = vmatprep.subr.mxu0 0.0
    %161 = vmatpush1.msra.mxu0 0.0
    %162 = vmatprep.subr.mxu0 0.0
    %163 = vmatpush1.msra.mxu0 0.0
    %164 = vmatprep.subr.mxu0 0.0
    %165 = vmatpush1.msra.mxu0 0.0
    %166 = vmatprep.subr.mxu0 0.0
    %167 = vmatpush1.msra.mxu0 0.0
    %168 = vmatprep.subr.mxu0 0.0
    %169 = vmatpush1.msra.mxu0 0.0
    %170 = vmatprep.subr.mxu0 0.0
    %171 = vmatpush1.msra.mxu0 0.0
    %172 = vmatprep.subr.mxu0 0.0
    %173 = vmatpush1.msra.mxu0 0.0
    %174 = vmatprep.subr.mxu0 0.0
    %175 = vmatpush1.msra.mxu0 0.0
    %176 = vmatprep.subr.mxu0 0.0
    %177 = vmatpush1.msra.mxu0 0.0
    %178 = vmatprep.subr.mxu0 0.0
    %179 = vmatpush1.msra.mxu0 0.0
    %180 = vmatprep.mubr.f32.mxu0 0.0
    %181 = vmatmul.mubr.f32.gmra.mrb[0].mxu0 %v114
    %v182 = vpop.f32.mrb[0].mxu0
    %v183 = vadd.f32 %v111, %v182
    %v184 = vpop.f32.mrb[0].mxu0
    %185 = vdwg.mxu0
    %v186 = vadd.f32 %v100, %v183
    %v187 = vxor.u32 %v186, 2147483648
    %v188 = vmul.f32 %v187, 1.442695
    %v189 = vpow.pop %v188
    %v190 = vadd.f32 %v189, 1.0
    %v191 = vrcp.pop %v190
    %v192 = vmul.f32 1.0, %v191
    %194 = vrot.lane.b32.xlu0 %v183, 96
    %v195 = vpop.permute.xlu0 %194
    %v197 = vmul.f32 %v192, %v195
    %199 = vrot.lane.b32.xlu0 %v197, 32
    %v200 = vpop.permute.xlu0 %199
    %v202 = vadd.f32 %v100, %v200
    %v203 = vtanh.pop %v202
    %v204 = vsub.f32 1.0, %v192
    %206 = vrot.lane.b32.xlu0 %v203, 112
    %v207 = vpop.permute.xlu0 %206
    %v209 = vmul.f32 %v204, %v207
    %v210 = vmul.f32 %v192, 0.0
    %v211 = vadd.f32 %v209, %v210
    %213 = vrot.lane.b32.xlu0 %v211, 112
    %v214 = vpop.permute.xlu0 %213
    %v215 = vsel %vm112, %v214, 0
    %217 = vmatprep.subr.mxu0 0.0
    %218 = vmatpush1.msra.mxu0 %v31
    %219 = vmatprep.subr.mxu0 0.0
    %220 = vmatpush1.msra.mxu0 %v32
    %221 = vmatprep.subr.mxu0 0.0
    %222 = vmatpush1.msra.mxu0 0.0
    %223 = vmatprep.subr.mxu0 0.0
    %224 = vmatpush1.msra.mxu0 0.0
    %225 = vmatprep.subr.mxu0 0.0
    %226 = vmatpush1.msra.mxu0 0.0
    %227 = vmatprep.subr.mxu0 0.0
    %228 = vmatpush1.msra.mxu0 0.0
    %229 = vmatprep.subr.mxu0 0.0
    %230 = vmatpush1.msra.mxu0 0.0
    %231 = vmatprep.subr.mxu0 0.0
    %232 = vmatpush1.msra.mxu0 0.0
    %233 = vmatprep.subr.mxu0 0.0
    %234 = vmatpush1.msra.mxu0 0.0
    %235 = vmatprep.subr.mxu0 0.0
    %236 = vmatpush1.msra.mxu0 0.0
    %237 = vmatprep.subr.mxu0 0.0
    %238 = vmatpush1.msra.mxu0 0.0
    %239 = vmatprep.subr.mxu0 0.0
    %240 = vmatpush1.msra.mxu0 0.0
    %241 = vmatprep.subr.mxu0 0.0
    %242 = vmatpush1.msra.mxu0 0.0
    %243 = vmatprep.subr.mxu0 0.0
    %244 = vmatpush1.msra.mxu0 0.0
    %245 = vmatprep.subr.mxu0 0.0
    %246 = vmatpush1.msra.mxu0 0.0
    %247 = vmatprep.subr.mxu0 0.0
    %248 = vmatpush1.msra.mxu0 0.0
    %249 = vmatprep.subr.mxu0 0.0
    %250 = vmatpush1.msra.mxu0 0.0
    %251 = vmatprep.subr.mxu0 0.0
    %252 = vmatpush1.msra.mxu0 0.0
    %253 = vmatprep.subr.mxu0 0.0
    %254 = vmatpush1.msra.mxu0 0.0
    %255 = vmatprep.subr.mxu0 0.0
    %256 = vmatpush1.msra.mxu0 0.0
    %257 = vmatprep.subr.mxu0 0.0
    %258 = vmatpush1.msra.mxu0 0.0
    %259 = vmatprep.subr.mxu0 0.0
    %260 = vmatpush1.msra.mxu0 0.0
    %261 = vmatprep.subr.mxu0 0.0
    %262 = vmatpush1.msra.mxu0 0.0
    %263 = vmatprep.subr.mxu0 0.0
    %264 = vmatpush1.msra.mxu0 0.0
    %265 = vmatprep.subr.mxu0 0.0
    %266 = vmatpush1.msra.mxu0 0.0
    %267 = vmatprep.subr.mxu0 0.0
    %268 = vmatpush1.msra.mxu0 0.0
    %269 = vmatprep.subr.mxu0 0.0
    %270 = vmatpush1.msra.mxu0 0.0
    %271 = vmatprep.subr.mxu0 0.0
    %272 = vmatpush1.msra.mxu0 0.0
    %273 = vmatprep.subr.mxu0 0.0
    %274 = vmatpush1.msra.mxu0 0.0
    %275 = vmatprep.subr.mxu0 0.0
    %276 = vmatpush1.msra.mxu0 0.0
    %277 = vmatprep.subr.mxu0 0.0
    %278 = vmatpush1.msra.mxu0 0.0
    %279 = vmatprep.subr.mxu0 0.0
    %280 = vmatpush1.msra.mxu0 0.0
    %281 = vmatprep.mubr.f32.mxu0 0.0
    %282 = vmatmul.mubr.f32.gmra.mrb[0].mxu0 %v215
    %v283 = vpop.f32.mrb[0].mxu0
    %v284 = vadd.f32 %v111, %v283
    %v285 = vpop.f32.mrb[0].mxu0
    %286 = vdwg.mxu0
    %v287 = vadd.f32 %v101, %v284
    %v288 = vxor.u32 %v287, 2147483648
    %v289 = vmul.f32 %v288, 1.442695
    %v290 = vpow.pop %v289
    %v291 = vadd.f32 %v290, 1.0
    %v292 = vrcp.pop %v291
    %v293 = vmul.f32 1.0, %v292
    %295 = vrot.lane.b32.xlu0 %v284, 96
    %v296 = vpop.permute.xlu0 %295
    %v298 = vmul.f32 %v293, %v296
    %300 = vrot.lane.b32.xlu0 %v298, 32
    %v301 = vpop.permute.xlu0 %300
    %v303 = vadd.f32 %v101, %v301
    %v304 = vtanh.pop %v303
    %v305 = vsub.f32 1.0, %v293
    %307 = vrot.lane.b32.xlu0 %v304, 112
    %v308 = vpop.permute.xlu0 %307
    %v310 = vmul.f32 %v305, %v308
    %v311 = vmul.f32 %v293, %v211
    %v312 = vadd.f32 %v310, %v311
    %314 = vrot.lane.b32.xlu0 %v312, 112
    %v315 = vpop.permute.xlu0 %314
    %v316 = vsel %vm112, %v315, 0
    %318 = vmatprep.subr.mxu0 0.0
    %319 = vmatpush1.msra.mxu0 %v31
    %320 = vmatprep.subr.mxu0 0.0
    %321 = vmatpush1.msra.mxu0 %v32
    %322 = vmatprep.subr.mxu0 0.0
    %323 = vmatpush1.msra.mxu0 0.0
    %324 = vmatprep.subr.mxu0 0.0
    %325 = vmatpush1.msra.mxu0 0.0
    %326 = vmatprep.subr.mxu0 0.0
    %327 = vmatpush1.msra.mxu0 0.0
    %328 = vmatprep.subr.mxu0 0.0
    %329 = vmatpush1.msra.mxu0 0.0
    %330 = vmatprep.subr.mxu0 0.0
    %331 = vmatpush1.msra.mxu0 0.0
    %332 = vmatprep.subr.mxu0 0.0
    %333 = vmatpush1.msra.mxu0 0.0
    %334 = vmatprep.subr.mxu0 0.0
    %335 = vmatpush1.msra.mxu0 0.0
    %336 = vmatprep.subr.mxu0 0.0
    %337 = vmatpush1.msra.mxu0 0.0
    %338 = vmatprep.subr.mxu0 0.0
    %339 = vmatpush1.msra.mxu0 0.0
    %340 = vmatprep.subr.mxu0 0.0
    %341 = vmatpush1.msra.mxu0 0.0
    %342 = vmatprep.subr.mxu0 0.0
    %343 = vmatpush1.msra.mxu0 0.0
    %344 = vmatprep.subr.mxu0 0.0
    %345 = vmatpush1.msra.mxu0 0.0
    %346 = vmatprep.subr.mxu0 0.0
    %347 = vmatpush1.msra.mxu0 0.0
    %348 = vmatprep.subr.mxu0 0.0
    %349 = vmatpush1.msra.mxu0 0.0
    %350 = vmatprep.subr.mxu0 0.0
    %351 = vmatpush1.msra.mxu0 0.0
    %352 = vmatprep.subr.mxu0 0.0
    %353 = vmatpush1.msra.mxu0 0.0
    %354 = vmatprep.subr.mxu0 0.0
    %355 = vmatpush1.msra.mxu0 0.0
    %356 = vmatprep.subr.mxu0 0.0
    %357 = vmatpush1.msra.mxu0 0.0
    %358 = vmatprep.subr.mxu0 0.0
    %359 = vmatpush1.msra.mxu0 0.0
    %360 = vmatprep.subr.mxu0 0.0
    %361 = vmatpush1.msra.mxu0 0.0
    %362 = vmatprep.subr.mxu0 0.0
    %363 = vmatpush1.msra.mxu0 0.0
    %364 = vmatprep.subr.mxu0 0.0
    %365 = vmatpush1.msra.mxu0 0.0
    %366 = vmatprep.subr.mxu0 0.0
    %367 = vmatpush1.msra.mxu0 0.0
    %368 = vmatprep.subr.mxu0 0.0
    %369 = vmatpush1.msra.mxu0 0.0
    %370 = vmatprep.subr.mxu0 0.0
    %371 = vmatpush1.msra.mxu0 0.0
    %372 = vmatprep.subr.mxu0 0.0
    %373 = vmatpush1.msra.mxu0 0.0
    %374 = vmatprep.subr.mxu0 0.0
    %375 = vmatpush1.msra.mxu0 0.0
    %376 = vmatprep.subr.mxu0 0.0
    %377 = vmatpush1.msra.mxu0 0.0
    %378 = vmatprep.subr.mxu0 0.0
    %379 = vmatpush1.msra.mxu0 0.0
    %380 = vmatprep.subr.mxu0 0.0
    %381 = vmatpush1.msra.mxu0 0.0
    %382 = vmatprep.mubr.f32.mxu0 0.0
    %383 = vmatmul.mubr.f32.gmra.mrb[0].mxu0 %v316
    %v384 = vpop.f32.mrb[0].mxu0
    %v385 = vadd.f32 %v111, %v384
    %v386 = vpop.f32.mrb[0].mxu0
    %387 = vdwg.mxu0
    %v388 = vadd.f32 %v102, %v385
    %v389 = vxor.u32 %v388, 2147483648
    %v390 = vmul.f32 %v389, 1.442695
    %v391 = vpow.pop %v390
    %v392 = vadd.f32 %v391, 1.0
    %v393 = vrcp.pop %v392
    %v394 = vmul.f32 1.0, %v393
    %396 = vrot.lane.b32.xlu0 %v385, 96
    %v397 = vpop.permute.xlu0 %396
    %v399 = vmul.f32 %v394, %v397
    %401 = vrot.lane.b32.xlu0 %v399, 32
    %v402 = vpop.permute.xlu0 %401
    %v404 = vadd.f32 %v102, %v402
    %v405 = vtanh.pop %v404
    %v406 = vsub.f32 1.0, %v394
    %408 = vrot.lane.b32.xlu0 %v405, 112
    %v409 = vpop.permute.xlu0 %408
    %v411 = vmul.f32 %v406, %v409
    %v412 = vmul.f32 %v394, %v312
    %v413 = vadd.f32 %v411, %v412
    %415 = vrot.lane.b32.xlu0 %v413, 112
    %v416 = vpop.permute.xlu0 %415
    %v417 = vsel %vm112, %v416, 0
    %419 = vmatprep.subr.mxu0 0.0
    %420 = vmatpush1.msra.mxu0 %v31
    %421 = vmatprep.subr.mxu0 0.0
    %422 = vmatpush1.msra.mxu0 %v32
    %423 = vmatprep.subr.mxu0 0.0
    %424 = vmatpush1.msra.mxu0 0.0
    %425 = vmatprep.subr.mxu0 0.0
    %426 = vmatpush1.msra.mxu0 0.0
    %427 = vmatprep.subr.mxu0 0.0
    %428 = vmatpush1.msra.mxu0 0.0
    %429 = vmatprep.subr.mxu0 0.0
    %430 = vmatpush1.msra.mxu0 0.0
    %431 = vmatprep.subr.mxu0 0.0
    %432 = vmatpush1.msra.mxu0 0.0
    %433 = vmatprep.subr.mxu0 0.0
    %434 = vmatpush1.msra.mxu0 0.0
    %435 = vmatprep.subr.mxu0 0.0
    %436 = vmatpush1.msra.mxu0 0.0
    %437 = vmatprep.subr.mxu0 0.0
    %438 = vmatpush1.msra.mxu0 0.0
    %439 = vmatprep.subr.mxu0 0.0
    %440 = vmatpush1.msra.mxu0 0.0
    %441 = vmatprep.subr.mxu0 0.0
    %442 = vmatpush1.msra.mxu0 0.0
    %443 = vmatprep.subr.mxu0 0.0
    %444 = vmatpush1.msra.mxu0 0.0
    %445 = vmatprep.subr.mxu0 0.0
    %446 = vmatpush1.msra.mxu0 0.0
    %447 = vmatprep.subr.mxu0 0.0
    %448 = vmatpush1.msra.mxu0 0.0
    %449 = vmatprep.subr.mxu0 0.0
    %450 = vmatpush1.msra.mxu0 0.0
    %451 = vmatprep.subr.mxu0 0.0
    %452 = vmatpush1.msra.mxu0 0.0
    %453 = vmatprep.subr.mxu0 0.0
    %454 = vmatpush1.msra.mxu0 0.0
    %455 = vmatprep.subr.mxu0 0.0
    %456 = vmatpush1.msra.mxu0 0.0
    %457 = vmatprep.subr.mxu0 0.0
    %458 = vmatpush1.msra.mxu0 0.0
    %459 = vmatprep.subr.mxu0 0.0
    %460 = vmatpush1.msra.mxu0 0.0
    %461 = vmatprep.subr.mxu0 0.0
    %462 = vmatpush1.msra.mxu0 0.0
    %463 = vmatprep.subr.mxu0 0.0
    %464 = vmatpush1.msra.mxu0 0.0
    %465 = vmatprep.subr.mxu0 0.0
    %466 = vmatpush1.msra.mxu0 0.0
    %467 = vmatprep.subr.mxu0 0.0
    %468 = vmatpush1.msra.mxu0 0.0
    %469 = vmatprep.subr.mxu0 0.0
    %470 = vmatpush1.msra.mxu0 0.0
    %471 = vmatprep.subr.mxu0 0.0
    %472 = vmatpush1.msra.mxu0 0.0
    %473 = vmatprep.subr.mxu0 0.0
    %474 = vmatpush1.msra.mxu0 0.0
    %475 = vmatprep.subr.mxu0 0.0
    %476 = vmatpush1.msra.mxu0 0.0
    %477 = vmatprep.subr.mxu0 0.0
    %478 = vmatpush1.msra.mxu0 0.0
    %479 = vmatprep.subr.mxu0 0.0
    %480 = vmatpush1.msra.mxu0 0.0
    %481 = vmatprep.subr.mxu0 0.0
    %482 = vmatpush1.msra.mxu0 0.0
    %483 = vmatprep.mubr.f32.mxu0 0.0
    %484 = vmatmul.mubr.f32.gmra.mrb[0].mxu0 %v417
    %v485 = vpop.f32.mrb[0].mxu0
    %v486 = vadd.f32 %v111, %v485
    %v487 = vpop.f32.mrb[0].mxu0
    %488 = vdwg.mxu0
    %v489 = vadd.f32 %v103, %v486
    %v490 = vxor.u32 %v489, 2147483648
    %v491 = vmul.f32 %v490, 1.442695
    %v492 = vpow.pop %v491
    %v493 = vadd.f32 %v492, 1.0
    %v494 = vrcp.pop %v493
    %v495 = vmul.f32 1.0, %v494
    %497 = vrot.lane.b32.xlu0 %v486, 96
    %v498 = vpop.permute.xlu0 %497
    %v500 = vmul.f32 %v495, %v498
    %502 = vrot.lane.b32.xlu0 %v500, 32
    %v503 = vpop.permute.xlu0 %502
    %v505 = vadd.f32 %v103, %v503
    %v506 = vtanh.pop %v505
    %v507 = vsub.f32 1.0, %v495
    %509 = vrot.lane.b32.xlu0 %v506, 112
    %v510 = vpop.permute.xlu0 %509
    %v512 = vmul.f32 %v507, %v510
    %v513 = vmul.f32 %v495, %v413
    %v514 = vadd.f32 %v512, %v513
    %516 = vrot.lane.b32.xlu0 %v514, 112
    %v517 = vpop.permute.xlu0 %516
    %v518 = vsel %vm112, %v517, 0
    %520 = vmatprep.subr.mxu0 0.0
    %521 = vmatpush1.msra.mxu0 %v31
    %522 = vmatprep.subr.mxu0 0.0
    %523 = vmatpush1.msra.mxu0 %v32
    %524 = vmatprep.subr.mxu0 0.0
    %525 = vmatpush1.msra.mxu0 0.0
    %526 = vmatprep.subr.mxu0 0.0
    %527 = vmatpush1.msra.mxu0 0.0
    %528 = vmatprep.subr.mxu0 0.0
    %529 = vmatpush1.msra.mxu0 0.0
    %530 = vmatprep.subr.mxu0 0.0
    %531 = vmatpush1.msra.mxu0 0.0
    %532 = vmatprep.subr.mxu0 0.0
    %533 = vmatpush1.msra.mxu0 0.0
    %534 = vmatprep.subr.mxu0 0.0
    %535 = vmatpush1.msra.mxu0 0.0
    %536 = vmatprep.subr.mxu0 0.0
    %537 = vmatpush1.msra.mxu0 0.0
    %538 = vmatprep.subr.mxu0 0.0
    %539 = vmatpush1.msra.mxu0 0.0
    %540 = vmatprep.subr.mxu0 0.0
    %541 = vmatpush1.msra.mxu0 0.0
    %542 = vmatprep.subr.mxu0 0.0
    %543 = vmatpush1.msra.mxu0 0.0
    %544 = vmatprep.subr.mxu0 0.0
    %545 = vmatpush1.msra.mxu0 0.0
    %546 = vmatprep.subr.mxu0 0.0
    %547 = vmatpush1.msra.mxu0 0.0
    %548 = vmatprep.subr.mxu0 0.0
    %549 = vmatpush1.msra.mxu0 0.0
    %550 = vmatprep.subr.mxu0 0.0
    %551 = vmatpush1.msra.mxu0 0.0
    %552 = vmatprep.subr.mxu0 0.0
    %553 = vmatpush1.msra.mxu0 0.0
    %554 = vmatprep.subr.mxu0 0.0
    %555 = vmatpush1.msra.mxu0 0.0
    %556 = vmatprep.subr.mxu0 0.0
    %557 = vmatpush1.msra.mxu0 0.0
    %558 = vmatprep.subr.mxu0 0.0
    %559 = vmatpush1.msra.mxu0 0.0
    %560 = vmatprep.subr.mxu0 0.0
    %561 = vmatpush1.msra.mxu0 0.0
    %562 = vmatprep.subr.mxu0 0.0
    %563 = vmatpush1.msra.mxu0 0.0
    %564 = vmatprep.subr.mxu0 0.0
    %565 = vmatpush1.msra.mxu0 0.0
    %566 = vmatprep.subr.mxu0 0.0
    %567 = vmatpush1.msra.mxu0 0.0
    %568 = vmatprep.subr.mxu0 0.0
    %569 = vmatpush1.msra.mxu0 0.0
    %570 = vmatprep.subr.mxu0 0.0
    %571 = vmatpush1.msra.mxu0 0.0
    %572 = vmatprep.subr.mxu0 0.0
    %573 = vmatpush1.msra.mxu0 0.0
    %574 = vmatprep.subr.mxu0 0.0
    %575 = vmatpush1.msra.mxu0 0.0
    %576 = vmatprep.subr.mxu0 0.0
    %577 = vmatpush1.msra.mxu0 0.0
    %578 = vmatprep.subr.mxu0 0.0
    %579 = vmatpush1.msra.mxu0 0.0
    %580 = vmatprep.subr.mxu0 0.0
    %581 = vmatpush1.msra.mxu0 0.0
    %582 = vmatprep.subr.mxu0 0.0
    %583 = vmatpush1.msra.mxu0 0.0
    %584 = vmatprep.mubr.f32.mxu0 0.0
    %585 = vmatmul.mubr.f32.gmra.mrb[0].mxu0 %v518
    %v586 = vpop.f32.mrb[0].mxu0
    %v587 = vadd.f32 %v111, %v586
    %v588 = vpop.f32.mrb[0].mxu0
    %589 = vdwg.mxu0
    %v590 = vadd.f32 %v104, %v587
    %v591 = vxor.u32 %v590, 2147483648
    %v592 = vmul.f32 %v591, 1.442695
    %v593 = vpow.pop %v592
    %v594 = vadd.f32 %v593, 1.0
    %v595 = vrcp.pop %v594
    %v596 = vmul.f32 1.0, %v595
    %598 = vrot.lane.b32.xlu0 %v587, 96
    %v599 = vpop.permute.xlu0 %598
    %v601 = vmul.f32 %v596, %v599
    %603 = vrot.lane.b32.xlu0 %v601, 32
    %v604 = vpop.permute.xlu0 %603
    %v606 = vadd.f32 %v104, %v604
    %v607 = vtanh.pop %v606
    %v608 = vsub.f32 1.0, %v596
    %610 = vrot.lane.b32.xlu0 %v607, 112
    %v611 = vpop.permute.xlu0 %610
    %v613 = vmul.f32 %v608, %v611
    %v614 = vmul.f32 %v596, %v514
    %v615 = vadd.f32 %v613, %v614
    %617 = vrot.lane.b32.xlu0 %v615, 112
    %v618 = vpop.permute.xlu0 %617
    %v619 = vsel %vm112, %v618, 0
    %621 = vmatprep.subr.mxu0 0.0
    %622 = vmatpush1.msra.mxu0 %v31
    %623 = vmatprep.subr.mxu0 0.0
    %624 = vmatpush1.msra.mxu0 %v32
    %625 = vmatprep.subr.mxu0 0.0
    %626 = vmatpush1.msra.mxu0 0.0
    %627 = vmatprep.subr.mxu0 0.0
    %628 = vmatpush1.msra.mxu0 0.0
    %629 = vmatprep.subr.mxu0 0.0
    %630 = vmatpush1.msra.mxu0 0.0
    %631 = vmatprep.subr.mxu0 0.0
    %632 = vmatpush1.msra.mxu0 0.0
    %633 = vmatprep.subr.mxu0 0.0
    %634 = vmatpush1.msra.mxu0 0.0
    %635 = vmatprep.subr.mxu0 0.0
    %636 = vmatpush1.msra.mxu0 0.0
    %637 = vmatprep.subr.mxu0 0.0
    %638 = vmatpush1.msra.mxu0 0.0
    %639 = vmatprep.subr.mxu0 0.0
    %640 = vmatpush1.msra.mxu0 0.0
    %641 = vmatprep.subr.mxu0 0.0
    %642 = vmatpush1.msra.mxu0 0.0
    %643 = vmatprep.subr.mxu0 0.0
    %644 = vmatpush1.msra.mxu0 0.0
    %645 = vmatprep.subr.mxu0 0.0
    %646 = vmatpush1.msra.mxu0 0.0
    %647 = vmatprep.subr.mxu0 0.0
    %648 = vmatpush1.msra.mxu0 0.0
    %649 = vmatprep.subr.mxu0 0.0
    %650 = vmatpush1.msra.mxu0 0.0
    %651 = vmatprep.subr.mxu0 0.0
    %652 = vmatpush1.msra.mxu0 0.0
    %653 = vmatprep.subr.mxu0 0.0
    %654 = vmatpush1.msra.mxu0 0.0
    %655 = vmatprep.subr.mxu0 0.0
    %656 = vmatpush1.msra.mxu0 0.0
    %657 = vmatprep.subr.mxu0 0.0
    %658 = vmatpush1.msra.mxu0 0.0
    %659 = vmatprep.subr.mxu0 0.0
    %660 = vmatpush1.msra.mxu0 0.0
    %661 = vmatprep.subr.mxu0 0.0
    %662 = vmatpush1.msra.mxu0 0.0
    %663 = vmatprep.subr.mxu0 0.0
    %664 = vmatpush1.msra.mxu0 0.0
    %665 = vmatprep.subr.mxu0 0.0
    %666 = vmatpush1.msra.mxu0 0.0
    %667 = vmatprep.subr.mxu0 0.0
    %668 = vmatpush1.msra.mxu0 0.0
    %669 = vmatprep.subr.mxu0 0.0
    %670 = vmatpush1.msra.mxu0 0.0
    %671 = vmatprep.subr.mxu0 0.0
    %672 = vmatpush1.msra.mxu0 0.0
    %673 = vmatprep.subr.mxu0 0.0
    %674 = vmatpush1.msra.mxu0 0.0
    %675 = vmatprep.subr.mxu0 0.0
    %676 = vmatpush1.msra.mxu0 0.0
    %677 = vmatprep.subr.mxu0 0.0
    %678 = vmatpush1.msra.mxu0 0.0
    %679 = vmatprep.subr.mxu0 0.0
    %680 = vmatpush1.msra.mxu0 0.0
    %681 = vmatprep.subr.mxu0 0.0
    %682 = vmatpush1.msra.mxu0 0.0
    %683 = vmatprep.subr.mxu0 0.0
    %684 = vmatpush1.msra.mxu0 0.0
    %685 = vmatprep.mubr.f32.mxu0 0.0
    %686 = vmatmul.mubr.f32.gmra.mrb[0].mxu0 %v619
    %v687 = vpop.f32.mrb[0].mxu0
    %v688 = vadd.f32 %v111, %v687
    %v689 = vpop.f32.mrb[0].mxu0
    %690 = vdwg.mxu0
    %v691 = vadd.f32 %v105, %v688
    %v692 = vxor.u32 %v691, 2147483648
    %v693 = vmul.f32 %v692, 1.442695
    %v694 = vpow.pop %v693
    %v695 = vadd.f32 %v694, 1.0
    %v696 = vrcp.pop %v695
    %v697 = vmul.f32 1.0, %v696
    %699 = vrot.lane.b32.xlu0 %v688, 96
    %v700 = vpop.permute.xlu0 %699
    %v702 = vmul.f32 %v697, %v700
    %704 = vrot.lane.b32.xlu0 %v702, 32
    %v705 = vpop.permute.xlu0 %704
    %v707 = vadd.f32 %v105, %v705
    %v708 = vtanh.pop %v707
    %v709 = vsub.f32 1.0, %v697
    %711 = vrot.lane.b32.xlu0 %v708, 112
    %v712 = vpop.permute.xlu0 %711
    %v714 = vmul.f32 %v709, %v712
    %v715 = vmul.f32 %v697, %v615
    %v716 = vadd.f32 %v714, %v715
    %718 = vrot.lane.b32.xlu0 %v716, 112
    %v719 = vpop.permute.xlu0 %718
    %v720 = vsel %vm112, %v719, 0
    %722 = vmatprep.subr.mxu0 0.0
    %723 = vmatpush1.msra.mxu0 %v31
    %724 = vmatprep.subr.mxu0 0.0
    %725 = vmatpush1.msra.mxu0 %v32
    %726 = vmatprep.subr.mxu0 0.0
    %727 = vmatpush1.msra.mxu0 0.0
    %728 = vmatprep.subr.mxu0 0.0
    %729 = vmatpush1.msra.mxu0 0.0
    %730 = vmatprep.subr.mxu0 0.0
    %731 = vmatpush1.msra.mxu0 0.0
    %732 = vmatprep.subr.mxu0 0.0
    %733 = vmatpush1.msra.mxu0 0.0
    %734 = vmatprep.subr.mxu0 0.0
    %735 = vmatpush1.msra.mxu0 0.0
    %736 = vmatprep.subr.mxu0 0.0
    %737 = vmatpush1.msra.mxu0 0.0
    %738 = vmatprep.subr.mxu0 0.0
    %739 = vmatpush1.msra.mxu0 0.0
    %740 = vmatprep.subr.mxu0 0.0
    %741 = vmatpush1.msra.mxu0 0.0
    %742 = vmatprep.subr.mxu0 0.0
    %743 = vmatpush1.msra.mxu0 0.0
    %744 = vmatprep.subr.mxu0 0.0
    %745 = vmatpush1.msra.mxu0 0.0
    %746 = vmatprep.subr.mxu0 0.0
    %747 = vmatpush1.msra.mxu0 0.0
    %748 = vmatprep.subr.mxu0 0.0
    %749 = vmatpush1.msra.mxu0 0.0
    %750 = vmatprep.subr.mxu0 0.0
    %751 = vmatpush1.msra.mxu0 0.0
    %752 = vmatprep.subr.mxu0 0.0
    %753 = vmatpush1.msra.mxu0 0.0
    %754 = vmatprep.subr.mxu0 0.0
    %755 = vmatpush1.msra.mxu0 0.0
    %756 = vmatprep.subr.mxu0 0.0
    %757 = vmatpush1.msra.mxu0 0.0
    %758 = vmatprep.subr.mxu0 0.0
    %759 = vmatpush1.msra.mxu0 0.0
    %760 = vmatprep.subr.mxu0 0.0
    %761 = vmatpush1.msra.mxu0 0.0
    %762 = vmatprep.subr.mxu0 0.0
    %763 = vmatpush1.msra.mxu0 0.0
    %764 = vmatprep.subr.mxu0 0.0
    %765 = vmatpush1.msra.mxu0 0.0
    %766 = vmatprep.subr.mxu0 0.0
    %767 = vmatpush1.msra.mxu0 0.0
    %768 = vmatprep.subr.mxu0 0.0
    %769 = vmatpush1.msra.mxu0 0.0
    %770 = vmatprep.subr.mxu0 0.0
    %771 = vmatpush1.msra.mxu0 0.0
    %772 = vmatprep.subr.mxu0 0.0
    %773 = vmatpush1.msra.mxu0 0.0
    %774 = vmatprep.subr.mxu0 0.0
    %775 = vmatpush1.msra.mxu0 0.0
    %776 = vmatprep.subr.mxu0 0.0
    %777 = vmatpush1.msra.mxu0 0.0
    %778 = vmatprep.subr.mxu0 0.0
    %779 = vmatpush1.msra.mxu0 0.0
    %780 = vmatprep.subr.mxu0 0.0
    %781 = vmatpush1.msra.mxu0 0.0
    %782 = vmatprep.subr.mxu0 0.0
    %783 = vmatpush1.msra.mxu0 0.0
    %784 = vmatprep.subr.mxu0 0.0
    %785 = vmatpush1.msra.mxu0 0.0
    %786 = vmatprep.mubr.f32.mxu0 0.0
    %787 = vmatmul.mubr.f32.gmra.mrb[0].mxu0 %v720
    %v788 = vpop.f32.mrb[0].mxu0
    %v789 = vadd.f32 %v111, %v788
    %v790 = vpop.f32.mrb[0].mxu0
    %791 = vdwg.mxu0
    %v792 = vadd.f32 %v106, %v789
    %v793 = vxor.u32 %v792, 2147483648
    %v794 = vmul.f32 %v793, 1.442695
    %v795 = vpow.pop %v794
    %v796 = vadd.f32 %v795, 1.0
    %v797 = vrcp.pop %v796
    %v798 = vmul.f32 1.0, %v797
    %800 = vrot.lane.b32.xlu0 %v789, 96
    %v801 = vpop.permute.xlu0 %800
    %v803 = vmul.f32 %v798, %v801
    %805 = vrot.lane.b32.xlu0 %v803, 32
    %v806 = vpop.permute.xlu0 %805
    %v808 = vadd.f32 %v106, %v806
    %v809 = vtanh.pop %v808
    %v810 = vsub.f32 1.0, %v798
    %812 = vrot.lane.b32.xlu0 %v809, 112
    %v813 = vpop.permute.xlu0 %812
    %v815 = vmul.f32 %v810, %v813
    %v816 = vmul.f32 %v798, %v716
    %v817 = vadd.f32 %v815, %v816
    %819 = vrot.lane.b32.xlu0 %v817, 112
    %v820 = vpop.permute.xlu0 %819
    %v821 = vsel %vm112, %v820, 0
    %823 = vmatprep.subr.mxu0 0.0
    %824 = vmatpush1.msra.mxu0 %v31
    %825 = vmatprep.subr.mxu0 0.0
    %826 = vmatpush1.msra.mxu0 %v32
    %827 = vmatprep.subr.mxu0 0.0
    %828 = vmatpush1.msra.mxu0 0.0
    %829 = vmatprep.subr.mxu0 0.0
    %830 = vmatpush1.msra.mxu0 0.0
    %831 = vmatprep.subr.mxu0 0.0
    %832 = vmatpush1.msra.mxu0 0.0
    %833 = vmatprep.subr.mxu0 0.0
    %834 = vmatpush1.msra.mxu0 0.0
    %835 = vmatprep.subr.mxu0 0.0
    %836 = vmatpush1.msra.mxu0 0.0
    %837 = vmatprep.subr.mxu0 0.0
    %838 = vmatpush1.msra.mxu0 0.0
    %839 = vmatprep.subr.mxu0 0.0
    %840 = vmatpush1.msra.mxu0 0.0
    %841 = vmatprep.subr.mxu0 0.0
    %842 = vmatpush1.msra.mxu0 0.0
    %843 = vmatprep.subr.mxu0 0.0
    %844 = vmatpush1.msra.mxu0 0.0
    %845 = vmatprep.subr.mxu0 0.0
    %846 = vmatpush1.msra.mxu0 0.0
    %847 = vmatprep.subr.mxu0 0.0
    %848 = vmatpush1.msra.mxu0 0.0
    %849 = vmatprep.subr.mxu0 0.0
    %850 = vmatpush1.msra.mxu0 0.0
    %851 = vmatprep.subr.mxu0 0.0
    %852 = vmatpush1.msra.mxu0 0.0
    %853 = vmatprep.subr.mxu0 0.0
    %854 = vmatpush1.msra.mxu0 0.0
    %855 = vmatprep.subr.mxu0 0.0
    %856 = vmatpush1.msra.mxu0 0.0
    %857 = vmatprep.subr.mxu0 0.0
    %858 = vmatpush1.msra.mxu0 0.0
    %859 = vmatprep.subr.mxu0 0.0
    %860 = vmatpush1.msra.mxu0 0.0
    %861 = vmatprep.subr.mxu0 0.0
    %862 = vmatpush1.msra.mxu0 0.0
    %863 = vmatprep.subr.mxu0 0.0
    %864 = vmatpush1.msra.mxu0 0.0
    %865 = vmatprep.subr.mxu0 0.0
    %866 = vmatpush1.msra.mxu0 0.0
    %867 = vmatprep.subr.mxu0 0.0
    %868 = vmatpush1.msra.mxu0 0.0
    %869 = vmatprep.subr.mxu0 0.0
    %870 = vmatpush1.msra.mxu0 0.0
    %871 = vmatprep.subr.mxu0 0.0
    %872 = vmatpush1.msra.mxu0 0.0
    %873 = vmatprep.subr.mxu0 0.0
    %874 = vmatpush1.msra.mxu0 0.0
    %875 = vmatprep.subr.mxu0 0.0
    %876 = vmatpush1.msra.mxu0 0.0
    %877 = vmatprep.subr.mxu0 0.0
    %878 = vmatpush1.msra.mxu0 0.0
    %879 = vmatprep.subr.mxu0 0.0
    %880 = vmatpush1.msra.mxu0 0.0
    %881 = vmatprep.subr.mxu0 0.0
    %882 = vmatpush1.msra.mxu0 0.0
    %883 = vmatprep.subr.mxu0 0.0
    %884 = vmatpush1.msra.mxu0 0.0
    %885 = vmatprep.subr.mxu0 0.0
    %886 = vmatpush1.msra.mxu0 0.0
    %887 = vmatprep.mubr.f32.mxu0 0.0
    %888 = vmatmul.mubr.f32.gmra.mrb[0].mxu0 %v821
    %v889 = vpop.f32.mrb[0].mxu0
    %v890 = vadd.f32 %v111, %v889
    %v891 = vpop.f32.mrb[0].mxu0
    %892 = vdwg.mxu0
    %v893 = vadd.f32 %v107, %v890
    %v894 = vxor.u32 %v893, 2147483648
    %v895 = vmul.f32 %v894, 1.442695
    %v896 = vpow.pop %v895
    %v897 = vadd.f32 %v896, 1.0
    %v898 = vrcp.pop %v897
    %v899 = vmul.f32 1.0, %v898
    %901 = vrot.lane.b32.xlu0 %v890, 96
    %v902 = vpop.permute.xlu0 %901
    %v904 = vmul.f32 %v899, %v902
    %906 = vrot.lane.b32.xlu0 %v904, 32
    %v907 = vpop.permute.xlu0 %906
    %v909 = vadd.f32 %v107, %v907
    %v910 = vtanh.pop %v909
    %v911 = vsub.f32 1.0, %v899
    %913 = vrot.lane.b32.xlu0 %v910, 112
    %v914 = vpop.permute.xlu0 %913
    %v916 = vmul.f32 %v911, %v914
    %v917 = vmul.f32 %v899, %v817
    %v918 = vadd.f32 %v916, %v917
    %v919 = vld [vmem:[#allocation2] sm:$0xff]
    %v920 = vld [vmem:[#allocation2 + $0x8] sm:$0xff]
    %v921 = vld [vmem:[%s3] sm:$0x1]
    %v922 = vlaneseq
    %v923 = vshrl.u32 %v922, 7
    %v924 = vsub.s32 0, %v923
    %v925 = vrot.slane %v921, %v924
    %927 = vrot.lane.b32.xlu0 %v918, 112
    %v928 = vpop.permute.xlu0 %927
    %v929 = vsel %vm112, %v928, 0
    %931 = vmatprep.subr.mxu0 0.0
    %932 = vmatpush1.msra.mxu0 %v919
    %933 = vmatprep.subr.mxu0 0.0
    %934 = vmatpush1.msra.mxu0 %v920
    %935 = vmatprep.subr.mxu0 0.0
    %936 = vmatpush1.msra.mxu0 0.0
    %937 = vmatprep.subr.mxu0 0.0
    %938 = vmatpush1.msra.mxu0 0.0
    %939 = vmatprep.subr.mxu0 0.0
    %940 = vmatpush1.msra.mxu0 0.0
    %941 = vmatprep.subr.mxu0 0.0
    %942 = vmatpush1.msra.mxu0 0.0
    %943 = vmatprep.subr.mxu0 0.0
    %944 = vmatpush1.msra.mxu0 0.0
    %945 = vmatprep.subr.mxu0 0.0
    %946 = vmatpush1.msra.mxu0 0.0
    %947 = vmatprep.subr.mxu0 0.0
    %948 = vmatpush1.msra.mxu0 0.0
    %949 = vmatprep.subr.mxu0 0.0
    %950 = vmatpush1.msra.mxu0 0.0
    %951 = vmatprep.subr.mxu0 0.0
    %952 = vmatpush1.msra.mxu0 0.0
    %953 = vmatprep.subr.mxu0 0.0
    %954 = vmatpush1.msra.mxu0 0.0
    %955 = vmatprep.subr.mxu0 0.0
    %956 = vmatpush1.msra.mxu0 0.0
    %957 = vmatprep.subr.mxu0 0.0
    %958 = vmatpush1.msra.mxu0 0.0
    %959 = vmatprep.subr.mxu0 0.0
    %960 = vmatpush1.msra.mxu0 0.0
    %961 = vmatprep.subr.mxu0 0.0
    %962 = vmatpush1.msra.mxu0 0.0
    %963 = vmatprep.subr.mxu0 0.0
    %964 = vmatpush1.msra.mxu0 0.0
    %965 = vmatprep.subr.mxu0 0.0
    %966 = vmatpush1.msra.mxu0 0.0
    %967 = vmatprep.subr.mxu0 0.0
    %968 = vmatpush1.msra.mxu0 0.0
    %969 = vmatprep.subr.mxu0 0.0
    %970 = vmatpush1.msra.mxu0 0.0
    %971 = vmatprep.subr.mxu0 0.0
    %972 = vmatpush1.msra.mxu0 0.0
    %973 = vmatprep.subr.mxu0 0.0
    %974 = vmatpush1.msra.mxu0 0.0
    %975 = vmatprep.subr.mxu0 0.0
    %976 = vmatpush1.msra.mxu0 0.0
    %977 = vmatprep.subr.mxu0 0.0
    %978 = vmatpush1.msra.mxu0 0.0
    %979 = vmatprep.subr.mxu0 0.0
    %980 = vmatpush1.msra.mxu0 0.0
    %981 = vmatprep.subr.mxu0 0.0
    %982 = vmatpush1.msra.mxu0 0.0
    %983 = vmatprep.subr.mxu0 0.0
    %984 = vmatpush1.msra.mxu0 0.0
    %985 = vmatprep.subr.mxu0 0.0
    %986 = vmatpush1.msra.mxu0 0.0
    %987 = vmatprep.subr.mxu0 0.0
    %988 = vmatpush1.msra.mxu0 0.0
    %989 = vmatprep.subr.mxu0 0.0
    %990 = vmatpush1.msra.mxu0 0.0
    %991 = vmatprep.subr.mxu0 0.0
    %992 = vmatpush1.msra.mxu0 0.0
    %993 = vmatprep.subr.mxu0 0.0
    %994 = vmatpush1.msra.mxu0 0.0
    %995 = vmatprep.mubr.f32.mxu0 0.0
    %996 = vmatmul.mubr.f32.gmra.mrb[0].mxu0 %v929
    %v997 = vpop.f32.mrb[0].mxu0
    %v998 = vadd.f32 %v925, %v997
    %v999 = vpop.f32.mrb[0].mxu0
    %1000 = vdwg.mxu0
    %v1001 = vmax.f32 %v998, 0.0
    %s1002 = scalar_lea.vmem [#allocation2], 16
    %v1003 = vld [vmem:[%s1002] sm:$0xff]
    %v1004 = vld [vmem:[%s1002 + $0x8] sm:$0xff]
    %v1005 = vld [vmem:[%s3 + $0x1] sm:$0x1]
    %v1006 = vlaneseq
    %v1007 = vshrl.u32 %v1006, 7
    %v1008 = vsub.s32 0, %v1007
    %v1009 = vrot.slane %v1005, %v1008
    %v1011 = vsel %vm112, %v1001, 0
    %1013 = vmatprep.subr.mxu0 0.0
    %1014 = vmatpush1.msra.mxu0 %v1003
    %1015 = vmatprep.subr.mxu0 0.0
    %1016 = vmatpush1.msra.mxu0 %v1004
    %1017 = vmatprep.subr.mxu0 0.0
    %1018 = vmatpush1.msra.mxu0 0.0
    %1019 = vmatprep.subr.mxu0 0.0
    %1020 = vmatpush1.msra.mxu0 0.0
    %1021 = vmatprep.subr.mxu0 0.0
    %1022 = vmatpush1.msra.mxu0 0.0
    %1023 = vmatprep.subr.mxu0 0.0
    %1024 = vmatpush1.msra.mxu0 0.0
    %1025 = vmatprep.subr.mxu0 0.0
    %1026 = vmatpush1.msra.mxu0 0.0
    %1027 = vmatprep.subr.mxu0 0.0
    %1028 = vmatpush1.msra.mxu0 0.0
    %1029 = vmatprep.subr.mxu0 0.0
    %1030 = vmatpush1.msra.mxu0 0.0
    %1031 = vmatprep.subr.mxu0 0.0
    %1032 = vmatpush1.msra.mxu0 0.0
    %1033 = vmatprep.subr.mxu0 0.0
    %1034 = vmatpush1.msra.mxu0 0.0
    %1035 = vmatprep.subr.mxu0 0.0
    %1036 = vmatpush1.msra.mxu0 0.0
    %1037 = vmatprep.subr.mxu0 0.0
    %1038 = vmatpush1.msra.mxu0 0.0
    %1039 = vmatprep.subr.mxu0 0.0
    %1040 = vmatpush1.msra.mxu0 0.0
    %1041 = vmatprep.subr.mxu0 0.0
    %1042 = vmatpush1.msra.mxu0 0.0
    %1043 = vmatprep.subr.mxu0 0.0
    %1044 = vmatpush1.msra.mxu0 0.0
    %1045 = vmatprep.subr.mxu0 0.0
    %1046 = vmatpush1.msra.mxu0 0.0
    %1047 = vmatprep.subr.mxu0 0.0
    %1048 = vmatpush1.msra.mxu0 0.0
    %1049 = vmatprep.subr.mxu0 0.0
    %1050 = vmatpush1.msra.mxu0 0.0
    %1051 = vmatprep.subr.mxu0 0.0
    %1052 = vmatpush1.msra.mxu0 0.0
    %1053 = vmatprep.subr.mxu0 0.0
    %1054 = vmatpush1.msra.mxu0 0.0
    %1055 = vmatprep.subr.mxu0 0.0
    %1056 = vmatpush1.msra.mxu0 0.0
    %1057 = vmatprep.subr.mxu0 0.0
    %1058 = vmatpush1.msra.mxu0 0.0
    %1059 = vmatprep.subr.mxu0 0.0
    %1060 = vmatpush1.msra.mxu0 0.0
    %1061 = vmatprep.subr.mxu0 0.0
    %1062 = vmatpush1.msra.mxu0 0.0
    %1063 = vmatprep.subr.mxu0 0.0
    %1064 = vmatpush1.msra.mxu0 0.0
    %1065 = vmatprep.subr.mxu0 0.0
    %1066 = vmatpush1.msra.mxu0 0.0
    %1067 = vmatprep.subr.mxu0 0.0
    %1068 = vmatpush1.msra.mxu0 0.0
    %1069 = vmatprep.subr.mxu0 0.0
    %1070 = vmatpush1.msra.mxu0 0.0
    %1071 = vmatprep.subr.mxu0 0.0
    %1072 = vmatpush1.msra.mxu0 0.0
    %1073 = vmatprep.subr.mxu0 0.0
    %1074 = vmatpush1.msra.mxu0 0.0
    %1075 = vmatprep.subr.mxu0 0.0
    %1076 = vmatpush1.msra.mxu0 0.0
    %1077 = vmatprep.mubr.f32.mxu0 0.0
    %1078 = vmatmul.mubr.f32.gmra.mrb[0].mxu0 %v1011
    %v1079 = vpop.f32.mrb[0].mxu0
    %v1080 = vadd.f32 %v1009, %v1079
    %v1081 = vpop.f32.mrb[0].mxu0
    %1082 = vdwg.mxu0
    %v1083 = vmax.f32 %v1080, 0.0
    %s1084 = scalar_lea.vmem [#allocation2], 32
    %v1085 = vld [vmem:[%s1084] sm:$0xff]
    %v1086 = vld [vmem:[%s1084 + $0x8] sm:$0xff]
    %v1087 = vld [vmem:[%s3 + $0x2] sm:$0x1]
    %v1088 = vlaneseq
    %v1089 = vshrl.u32 %v1088, 7
    %v1090 = vsub.s32 0, %v1089
    %v1091 = vrot.slane %v1087, %v1090
    %v1093 = vsel %vm112, %v1083, 0
    %1095 = vmatprep.subr.mxu0 0.0
    %1096 = vmatpush1.msra.mxu0 %v1085
    %1097 = vmatprep.subr.mxu0 0.0
    %1098 = vmatpush1.msra.mxu0 %v1086
    %1099 = vmatprep.subr.mxu0 0.0
    %1100 = vmatpush1.msra.mxu0 0.0
    %1101 = vmatprep.subr.mxu0 0.0
    %1102 = vmatpush1.msra.mxu0 0.0
    %1103 = vmatprep.subr.mxu0 0.0
    %1104 = vmatpush1.msra.mxu0 0.0
    %1105 = vmatprep.subr.mxu0 0.0
    %1106 = vmatpush1.msra.mxu0 0.0
    %1107 = vmatprep.subr.mxu0 0.0
    %1108 = vmatpush1.msra.mxu0 0.0
    %1109 = vmatprep.subr.mxu0 0.0
    %1110 = vmatpush1.msra.mxu0 0.0
    %1111 = vmatprep.subr.mxu0 0.0
    %1112 = vmatpush1.msra.mxu0 0.0
    %1113 = vmatprep.subr.mxu0 0.0
    %1114 = vmatpush1.msra.mxu0 0.0
    %1115 = vmatprep.subr.mxu0 0.0
    %1116 = vmatpush1.msra.mxu0 0.0
    %1117 = vmatprep.subr.mxu0 0.0
    %1118 = vmatpush1.msra.mxu0 0.0
    %1119 = vmatprep.subr.mxu0 0.0
    %1120 = vmatpush1.msra.mxu0 0.0
    %1121 = vmatprep.subr.mxu0 0.0
    %1122 = vmatpush1.msra.mxu0 0.0
    %1123 = vmatprep.subr.mxu0 0.0
    %1124 = vmatpush1.msra.mxu0 0.0
    %1125 = vmatprep.subr.mxu0 0.0
    %1126 = vmatpush1.msra.mxu0 0.0
    %1127 = vmatprep.subr.mxu0 0.0
    %1128 = vmatpush1.msra.mxu0 0.0
    %1129 = vmatprep.subr.mxu0 0.0
    %1130 = vmatpush1.msra.mxu0 0.0
    %1131 = vmatprep.subr.mxu0 0.0
    %1132 = vmatpush1.msra.mxu0 0.0
    %1133 = vmatprep.subr.mxu0 0.0
    %1134 = vmatpush1.msra.mxu0 0.0
    %1135 = vmatprep.subr.mxu0 0.0
    %1136 = vmatpush1.msra.mxu0 0.0
    %1137 = vmatprep.subr.mxu0 0.0
    %1138 = vmatpush1.msra.mxu0 0.0
    %1139 = vmatprep.subr.mxu0 0.0
    %1140 = vmatpush1.msra.mxu0 0.0
    %1141 = vmatprep.subr.mxu0 0.0
    %1142 = vmatpush1.msra.mxu0 0.0
    %1143 = vmatprep.subr.mxu0 0.0
    %1144 = vmatpush1.msra.mxu0 0.0
    %1145 = vmatprep.subr.mxu0 0.0
    %1146 = vmatpush1.msra.mxu0 0.0
    %1147 = vmatprep.subr.mxu0 0.0
    %1148 = vmatpush1.msra.mxu0 0.0
    %1149 = vmatprep.subr.mxu0 0.0
    %1150 = vmatpush1.msra.mxu0 0.0
    %1151 = vmatprep.subr.mxu0 0.0
    %1152 = vmatpush1.msra.mxu0 0.0
    %1153 = vmatprep.subr.mxu0 0.0
    %1154 = vmatpush1.msra.mxu0 0.0
    %1155 = vmatprep.subr.mxu0 0.0
    %1156 = vmatpush1.msra.mxu0 0.0
    %1157 = vmatprep.subr.mxu0 0.0
    %1158 = vmatpush1.msra.mxu0 0.0
    %1159 = vmatprep.mubr.f32.mxu0 0.0
    %1160 = vmatmul.mubr.f32.gmra.mrb[0].mxu0 %v1093
    %v1161 = vpop.f32.mrb[0].mxu0
    %v1162 = vadd.f32 %v1091, %v1161
    %v1163 = vpop.f32.mrb[0].mxu0
    %1164 = vdwg.mxu0
    %v1165 = vmax.f32 %v1162, 0.0
    %s1166 = scalar_lea.vmem [#allocation2], 48
    %v1167 = vld [vmem:[%s1166] sm:$0xff]
    %v1168 = vld [vmem:[%s1166 + $0x8] sm:$0xff]
    %v1169 = vld [vmem:[%s3 + $0x3] sm:$0x1]
    %v1170 = vlaneseq
    %v1171 = vshrl.u32 %v1170, 7
    %v1172 = vsub.s32 0, %v1171
    %v1173 = vrot.slane %v1169, %v1172
    %v1175 = vsel %vm112, %v1165, 0
    %1177 = vmatprep.subr.mxu0 0.0
    %1178 = vmatpush1.msra.mxu0 %v1167
    %1179 = vmatprep.subr.mxu0 0.0
    %1180 = vmatpush1.msra.mxu0 %v1168
    %1181 = vmatprep.subr.mxu0 0.0
    %1182 = vmatpush1.msra.mxu0 0.0
    %1183 = vmatprep.subr.mxu0 0.0
    %1184 = vmatpush1.msra.mxu0 0.0
    %1185 = vmatprep.subr.mxu0 0.0
    %1186 = vmatpush1.msra.mxu0 0.0
    %1187 = vmatprep.subr.mxu0 0.0
    %1188 = vmatpush1.msra.mxu0 0.0
    %1189 = vmatprep.subr.mxu0 0.0
    %1190 = vmatpush1.msra.mxu0 0.0
    %1191 = vmatprep.subr.mxu0 0.0
    %1192 = vmatpush1.msra.mxu0 0.0
    %1193 = vmatprep.subr.mxu0 0.0
    %1194 = vmatpush1.msra.mxu0 0.0
    %1195 = vmatprep.subr.mxu0 0.0
    %1196 = vmatpush1.msra.mxu0 0.0
    %1197 = vmatprep.subr.mxu0 0.0
    %1198 = vmatpush1.msra.mxu0 0.0
    %1199 = vmatprep.subr.mxu0 0.0
    %1200 = vmatpush1.msra.mxu0 0.0
    %1201 = vmatprep.subr.mxu0 0.0
    %1202 = vmatpush1.msra.mxu0 0.0
    %1203 = vmatprep.subr.mxu0 0.0
    %1204 = vmatpush1.msra.mxu0 0.0
    %1205 = vmatprep.subr.mxu0 0.0
    %1206 = vmatpush1.msra.mxu0 0.0
    %1207 = vmatprep.subr.mxu0 0.0
    %1208 = vmatpush1.msra.mxu0 0.0
    %1209 = vmatprep.subr.mxu0 0.0
    %1210 = vmatpush1.msra.mxu0 0.0
    %1211 = vmatprep.subr.mxu0 0.0
    %1212 = vmatpush1.msra.mxu0 0.0
    %1213 = vmatprep.subr.mxu0 0.0
    %1214 = vmatpush1.msra.mxu0 0.0
    %1215 = vmatprep.subr.mxu0 0.0
    %1216 = vmatpush1.msra.mxu0 0.0
    %1217 = vmatprep.subr.mxu0 0.0
    %1218 = vmatpush1.msra.mxu0 0.0
    %1219 = vmatprep.subr.mxu0 0.0
    %1220 = vmatpush1.msra.mxu0 0.0
    %1221 = vmatprep.subr.mxu0 0.0
    %1222 = vmatpush1.msra.mxu0 0.0
    %1223 = vmatprep.subr.mxu0 0.0
    %1224 = vmatpush1.msra.mxu0 0.0
    %1225 = vmatprep.subr.mxu0 0.0
    %1226 = vmatpush1.msra.mxu0 0.0
    %1227 = vmatprep.subr.mxu0 0.0
    %1228 = vmatpush1.msra.mxu0 0.0
    %1229 = vmatprep.subr.mxu0 0.0
    %1230 = vmatpush1.msra.mxu0 0.0
    %1231 = vmatprep.subr.mxu0 0.0
    %1232 = vmatpush1.msra.mxu0 0.0
    %1233 = vmatprep.subr.mxu0 0.0
    %1234 = vmatpush1.msra.mxu0 0.0
    %1235 = vmatprep.subr.mxu0 0.0
    %1236 = vmatpush1.msra.mxu0 0.0
    %1237 = vmatprep.subr.mxu0 0.0
    %1238 = vmatpush1.msra.mxu0 0.0
    %1239 = vmatprep.subr.mxu0 0.0
    %1240 = vmatpush1.msra.mxu0 0.0
    %1241 = vmatprep.mubr.f32.mxu0 0.0
    %1242 = vmatmul.mubr.f32.gmra.mrb[0].mxu0 %v1175
    %v1243 = vpop.f32.mrb[0].mxu0
    %v1244 = vadd.f32 %v1173, %v1243
    %v1245 = vpop.f32.mrb[0].mxu0
    %1246 = vdwg.mxu0
    %v1247 = vmax.f32 %v1244, 0.0
    %s1248 = scalar_lea.vmem [#allocation2], 64
    %v1249 = vld [vmem:[%s1248] sm:$0xff]
    %v1250 = vld [vmem:[%s1248 + $0x8] sm:$0xff]
    %v1251 = vld [vmem:[%s3 + $0x4] sm:$0x1]
    %v1252 = vlaneseq
    %v1253 = vshrl.u32 %v1252, 7
    %v1254 = vsub.s32 0, %v1253
    %v1255 = vrot.slane %v1251, %v1254
    %v1257 = vsel %vm112, %v1247, 0
    %1259 = vmatprep.subr.mxu0 0.0
    %1260 = vmatpush1.msra.mxu0 %v1249
    %1261 = vmatprep.subr.mxu0 0.0
    %1262 = vmatpush1.msra.mxu0 %v1250
    %1263 = vmatprep.subr.mxu0 0.0
    %1264 = vmatpush1.msra.mxu0 0.0
    %1265 = vmatprep.subr.mxu0 0.0
    %1266 = vmatpush1.msra.mxu0 0.0
    %1267 = vmatprep.subr.mxu0 0.0
    %1268 = vmatpush1.msra.mxu0 0.0
    %1269 = vmatprep.subr.mxu0 0.0
    %1270 = vmatpush1.msra.mxu0 0.0
    %1271 = vmatprep.subr.mxu0 0.0
    %1272 = vmatpush1.msra.mxu0 0.0
    %1273 = vmatprep.subr.mxu0 0.0
    %1274 = vmatpush1.msra.mxu0 0.0
    %1275 = vmatprep.subr.mxu0 0.0
    %1276 = vmatpush1.msra.mxu0 0.0
    %1277 = vmatprep.subr.mxu0 0.0
    %1278 = vmatpush1.msra.mxu0 0.0
    %1279 = vmatprep.subr.mxu0 0.0
    %1280 = vmatpush1.msra.mxu0 0.0
    %1281 = vmatprep.subr.mxu0 0.0
    %1282 = vmatpush1.msra.mxu0 0.0
    %1283 = vmatprep.subr.mxu0 0.0
    %1284 = vmatpush1.msra.mxu0 0.0
    %1285 = vmatprep.subr.mxu0 0.0
    %1286 = vmatpush1.msra.mxu0 0.0
    %1287 = vmatprep.subr.mxu0 0.0
    %1288 = vmatpush1.msra.mxu0 0.0
    %1289 = vmatprep.subr.mxu0 0.0
    %1290 = vmatpush1.msra.mxu0 0.0
    %1291 = vmatprep.subr.mxu0 0.0
    %1292 = vmatpush1.msra.mxu0 0.0
    %1293 = vmatprep.subr.mxu0 0.0
    %1294 = vmatpush1.msra.mxu0 0.0
    %1295 = vmatprep.subr.mxu0 0.0
    %1296 = vmatpush1.msra.mxu0 0.0
    %1297 = vmatprep.subr.mxu0 0.0
    %1298 = vmatpush1.msra.mxu0 0.0
    %1299 = vmatprep.subr.mxu0 0.0
    %1300 = vmatpush1.msra.mxu0 0.0
    %1301 = vmatprep.subr.mxu0 0.0
    %1302 = vmatpush1.msra.mxu0 0.0
    %1303 = vmatprep.subr.mxu0 0.0
    %1304 = vmatpush1.msra.mxu0 0.0
    %1305 = vmatprep.subr.mxu0 0.0
    %1306 = vmatpush1.msra.mxu0 0.0
    %1307 = vmatprep.subr.mxu0 0.0
    %1308 = vmatpush1.msra.mxu0 0.0
    %1309 = vmatprep.subr.mxu0 0.0
    %1310 = vmatpush1.msra.mxu0 0.0
    %1311 = vmatprep.subr.mxu0 0.0
    %1312 = vmatpush1.msra.mxu0 0.0
    %1313 = vmatprep.subr.mxu0 0.0
    %1314 = vmatpush1.msra.mxu0 0.0
    %1315 = vmatprep.subr.mxu0 0.0
    %1316 = vmatpush1.msra.mxu0 0.0
    %1317 = vmatprep.subr.mxu0 0.0
    %1318 = vmatpush1.msra.mxu0 0.0
    %1319 = vmatprep.subr.mxu0 0.0
    %1320 = vmatpush1.msra.mxu0 0.0
    %1321 = vmatprep.subr.mxu0 0.0
    %1322 = vmatpush1.msra.mxu0 0.0
    %1323 = vmatprep.mubr.f32.mxu0 0.0
    %1324 = vmatmul.mubr.f32.gmra.mrb[0].mxu0 %v1257
    %v1325 = vpop.f32.mrb[0].mxu0
    %v1326 = vadd.f32 %v1255, %v1325
    %v1327 = vpop.f32.mrb[0].mxu0
    %1328 = vdwg.mxu0
    %v1329 = vmax.f32 %v1326, 0.0
    %s1330 = scalar_lea.vmem [#allocation2], 80
    %v1331 = vld [vmem:[%s1330] sm:$0xff]
    %v1332 = vld [vmem:[%s1330 + $0x8] sm:$0xff]
    %v1333 = vld [vmem:[%s3 + $0x5] sm:$0x1]
    %v1334 = vlaneseq
    %v1335 = vshrl.u32 %v1334, 7
    %v1336 = vsub.s32 0, %v1335
    %v1337 = vrot.slane %v1333, %v1336
    %v1339 = vsel %vm112, %v1329, 0
    %1341 = vmatprep.subr.mxu0 0.0
    %1342 = vmatpush1.msra.mxu0 %v1331
    %1343 = vmatprep.subr.mxu0 0.0
    %1344 = vmatpush1.msra.mxu0 %v1332
    %1345 = vmatprep.subr.mxu0 0.0
    %1346 = vmatpush1.msra.mxu0 0.0
    %1347 = vmatprep.subr.mxu0 0.0
    %1348 = vmatpush1.msra.mxu0 0.0
    %1349 = vmatprep.subr.mxu0 0.0
    %1350 = vmatpush1.msra.mxu0 0.0
    %1351 = vmatprep.subr.mxu0 0.0
    %1352 = vmatpush1.msra.mxu0 0.0
    %1353 = vmatprep.subr.mxu0 0.0
    %1354 = vmatpush1.msra.mxu0 0.0
    %1355 = vmatprep.subr.mxu0 0.0
    %1356 = vmatpush1.msra.mxu0 0.0
    %1357 = vmatprep.subr.mxu0 0.0
    %1358 = vmatpush1.msra.mxu0 0.0
    %1359 = vmatprep.subr.mxu0 0.0
    %1360 = vmatpush1.msra.mxu0 0.0
    %1361 = vmatprep.subr.mxu0 0.0
    %1362 = vmatpush1.msra.mxu0 0.0
    %1363 = vmatprep.subr.mxu0 0.0
    %1364 = vmatpush1.msra.mxu0 0.0
    %1365 = vmatprep.subr.mxu0 0.0
    %1366 = vmatpush1.msra.mxu0 0.0
    %1367 = vmatprep.subr.mxu0 0.0
    %1368 = vmatpush1.msra.mxu0 0.0
    %1369 = vmatprep.subr.mxu0 0.0
    %1370 = vmatpush1.msra.mxu0 0.0
    %1371 = vmatprep.subr.mxu0 0.0
    %1372 = vmatpush1.msra.mxu0 0.0
    %1373 = vmatprep.subr.mxu0 0.0
    %1374 = vmatpush1.msra.mxu0 0.0
    %1375 = vmatprep.subr.mxu0 0.0
    %1376 = vmatpush1.msra.mxu0 0.0
    %1377 = vmatprep.subr.mxu0 0.0
    %1378 = vmatpush1.msra.mxu0 0.0
    %1379 = vmatprep.subr.mxu0 0.0
    %1380 = vmatpush1.msra.mxu0 0.0
    %1381 = vmatprep.subr.mxu0 0.0
    %1382 = vmatpush1.msra.mxu0 0.0
    %1383 = vmatprep.subr.mxu0 0.0
    %1384 = vmatpush1.msra.mxu0 0.0
    %1385 = vmatprep.subr.mxu0 0.0
    %1386 = vmatpush1.msra.mxu0 0.0
    %1387 = vmatprep.subr.mxu0 0.0
    %1388 = vmatpush1.msra.mxu0 0.0
    %1389 = vmatprep.subr.mxu0 0.0
    %1390 = vmatpush1.msra.mxu0 0.0
    %1391 = vmatprep.subr.mxu0 0.0
    %1392 = vmatpush1.msra.mxu0 0.0
    %1393 = vmatprep.subr.mxu0 0.0
    %1394 = vmatpush1.msra.mxu0 0.0
    %1395 = vmatprep.subr.mxu0 0.0
    %1396 = vmatpush1.msra.mxu0 0.0
    %1397 = vmatprep.subr.mxu0 0.0
    %1398 = vmatpush1.msra.mxu0 0.0
    %1399 = vmatprep.subr.mxu0 0.0
    %1400 = vmatpush1.msra.mxu0 0.0
    %1401 = vmatprep.subr.mxu0 0.0
    %1402 = vmatpush1.msra.mxu0 0.0
    %1403 = vmatprep.subr.mxu0 0.0
    %1404 = vmatpush1.msra.mxu0 0.0
    %1405 = vmatprep.mubr.f32.mxu0 0.0
    %1406 = vmatmul.mubr.f32.gmra.mrb[0].mxu0 %v1339
    %v1407 = vpop.f32.mrb[0].mxu0
    %v1408 = vadd.f32 %v1337, %v1407
    %v1409 = vpop.f32.mrb[0].mxu0
    %1410 = vdwg.mxu0
    %v1411 = vmax.f32 %v1408, 0.0
    %s1412 = scalar_lea.vmem [#allocation2], 96
    %v1413 = vld [vmem:[%s1412] sm:$0xff]
    %v1414 = vld [vmem:[%s1412 + $0x8] sm:$0xff]
    %v1415 = vld [vmem:[%s3 + $0x6] sm:$0x1]
    %v1416 = vlaneseq
    %v1417 = vshrl.u32 %v1416, 7
    %v1418 = vsub.s32 0, %v1417
    %v1419 = vrot.slane %v1415, %v1418
    %v1421 = vsel %vm112, %v1411, 0
    %1423 = vmatprep.subr.mxu0 0.0
    %1424 = vmatpush1.msra.mxu0 %v1413
    %1425 = vmatprep.subr.mxu0 0.0
    %1426 = vmatpush1.msra.mxu0 %v1414
    %1427 = vmatprep.subr.mxu0 0.0
    %1428 = vmatpush1.msra.mxu0 0.0
    %1429 = vmatprep.subr.mxu0 0.0
    %1430 = vmatpush1.msra.mxu0 0.0
    %1431 = vmatprep.subr.mxu0 0.0
    %1432 = vmatpush1.msra.mxu0 0.0
    %1433 = vmatprep.subr.mxu0 0.0
    %1434 = vmatpush1.msra.mxu0 0.0
    %1435 = vmatprep.subr.mxu0 0.0
    %1436 = vmatpush1.msra.mxu0 0.0
    %1437 = vmatprep.subr.mxu0 0.0
    %1438 = vmatpush1.msra.mxu0 0.0
    %1439 = vmatprep.subr.mxu0 0.0
    %1440 = vmatpush1.msra.mxu0 0.0
    %1441 = vmatprep.subr.mxu0 0.0
    %1442 = vmatpush1.msra.mxu0 0.0
    %1443 = vmatprep.subr.mxu0 0.0
    %1444 = vmatpush1.msra.mxu0 0.0
    %1445 = vmatprep.subr.mxu0 0.0
    %1446 = vmatpush1.msra.mxu0 0.0
    %1447 = vmatprep.subr.mxu0 0.0
    %1448 = vmatpush1.msra.mxu0 0.0
    %1449 = vmatprep.subr.mxu0 0.0
    %1450 = vmatpush1.msra.mxu0 0.0
    %1451 = vmatprep.subr.mxu0 0.0
    %1452 = vmatpush1.msra.mxu0 0.0
    %1453 = vmatprep.subr.mxu0 0.0
    %1454 = vmatpush1.msra.mxu0 0.0
    %1455 = vmatprep.subr.mxu0 0.0
    %1456 = vmatpush1.msra.mxu0 0.0
    %1457 = vmatprep.subr.mxu0 0.0
    %1458 = vmatpush1.msra.mxu0 0.0
    %1459 = vmatprep.subr.mxu0 0.0
    %1460 = vmatpush1.msra.mxu0 0.0
    %1461 = vmatprep.subr.mxu0 0.0
    %1462 = vmatpush1.msra.mxu0 0.0
    %1463 = vmatprep.subr.mxu0 0.0
    %1464 = vmatpush1.msra.mxu0 0.0
    %1465 = vmatprep.subr.mxu0 0.0
    %1466 = vmatpush1.msra.mxu0 0.0
    %1467 = vmatprep.subr.mxu0 0.0
    %1468 = vmatpush1.msra.mxu0 0.0
    %1469 = vmatprep.subr.mxu0 0.0
    %1470 = vmatpush1.msra.mxu0 0.0
    %1471 = vmatprep.subr.mxu0 0.0
    %1472 = vmatpush1.msra.mxu0 0.0
    %1473 = vmatprep.subr.mxu0 0.0
    %1474 = vmatpush1.msra.mxu0 0.0
    %1475 = vmatprep.subr.mxu0 0.0
    %1476 = vmatpush1.msra.mxu0 0.0
    %1477 = vmatprep.subr.mxu0 0.0
    %1478 = vmatpush1.msra.mxu0 0.0
    %1479 = vmatprep.subr.mxu0 0.0
    %1480 = vmatpush1.msra.mxu0 0.0
    %1481 = vmatprep.subr.mxu0 0.0
    %1482 = vmatpush1.msra.mxu0 0.0
    %1483 = vmatprep.subr.mxu0 0.0
    %1484 = vmatpush1.msra.mxu0 0.0
    %1485 = vmatprep.subr.mxu0 0.0
    %1486 = vmatpush1.msra.mxu0 0.0
    %1487 = vmatprep.mubr.f32.mxu0 0.0
    %1488 = vmatmul.mubr.f32.gmra.mrb[0].mxu0 %v1421
    %v1489 = vpop.f32.mrb[0].mxu0
    %v1490 = vadd.f32 %v1419, %v1489
    %v1491 = vpop.f32.mrb[0].mxu0
    %1492 = vdwg.mxu0
    %v1493 = vmax.f32 %v1490, 0.0
    %s1494 = scalar_lea.vmem [#allocation2], 112
    %v1495 = vld [vmem:[%s1494] sm:$0xff]
    %v1496 = vld [vmem:[%s1494 + $0x8] sm:$0xff]
    %v1497 = vld [vmem:[%s3 + $0x7] sm:$0x1]
    %v1498 = vlaneseq
    %v1499 = vshrl.u32 %v1498, 7
    %v1500 = vsub.s32 0, %v1499
    %v1501 = vrot.slane %v1497, %v1500
    %v1503 = vsel %vm112, %v1493, 0
    %1505 = vmatprep.subr.mxu0 0.0
    %1506 = vmatpush1.msra.mxu0 %v1495
    %1507 = vmatprep.subr.mxu0 0.0
    %1508 = vmatpush1.msra.mxu0 %v1496
    %1509 = vmatprep.subr.mxu0 0.0
    %1510 = vmatpush1.msra.mxu0 0.0
    %1511 = vmatprep.subr.mxu0 0.0
    %1512 = vmatpush1.msra.mxu0 0.0
    %1513 = vmatprep.subr.mxu0 0.0
    %1514 = vmatpush1.msra.mxu0 0.0
    %1515 = vmatprep.subr.mxu0 0.0
    %1516 = vmatpush1.msra.mxu0 0.0
    %1517 = vmatprep.subr.mxu0 0.0
    %1518 = vmatpush1.msra.mxu0 0.0
    %1519 = vmatprep.subr.mxu0 0.0
    %1520 = vmatpush1.msra.mxu0 0.0
    %1521 = vmatprep.subr.mxu0 0.0
    %1522 = vmatpush1.msra.mxu0 0.0
    %1523 = vmatprep.subr.mxu0 0.0
    %1524 = vmatpush1.msra.mxu0 0.0
    %1525 = vmatprep.subr.mxu0 0.0
    %1526 = vmatpush1.msra.mxu0 0.0
    %1527 = vmatprep.subr.mxu0 0.0
    %1528 = vmatpush1.msra.mxu0 0.0
    %1529 = vmatprep.subr.mxu0 0.0
    %1530 = vmatpush1.msra.mxu0 0.0
    %1531 = vmatprep.subr.mxu0 0.0
    %1532 = vmatpush1.msra.mxu0 0.0
    %1533 = vmatprep.subr.mxu0 0.0
    %1534 = vmatpush1.msra.mxu0 0.0
    %1535 = vmatprep.subr.mxu0 0.0
    %1536 = vmatpush1.msra.mxu0 0.0
    %1537 = vmatprep.subr.mxu0 0.0
    %1538 = vmatpush1.msra.mxu0 0.0
    %1539 = vmatprep.subr.mxu0 0.0
    %1540 = vmatpush1.msra.mxu0 0.0
    %1541 = vmatprep.subr.mxu0 0.0
    %1542 = vmatpush1.msra.mxu0 0.0
    %1543 = vmatprep.subr.mxu0 0.0
    %1544 = vmatpush1.msra.mxu0 0.0
    %1545 = vmatprep.subr.mxu0 0.0
    %1546 = vmatpush1.msra.mxu0 0.0
    %1547 = vmatprep.subr.mxu0 0.0
    %1548 = vmatpush1.msra.mxu0 0.0
    %1549 = vmatprep.subr.mxu0 0.0
    %1550 = vmatpush1.msra.mxu0 0.0
    %1551 = vmatprep.subr.mxu0 0.0
    %1552 = vmatpush1.msra.mxu0 0.0
    %1553 = vmatprep.subr.mxu0 0.0
    %1554 = vmatpush1.msra.mxu0 0.0
    %1555 = vmatprep.subr.mxu0 0.0
    %1556 = vmatpush1.msra.mxu0 0.0
    %1557 = vmatprep.subr.mxu0 0.0
    %1558 = vmatpush1.msra.mxu0 0.0
    %1559 = vmatprep.subr.mxu0 0.0
    %1560 = vmatpush1.msra.mxu0 0.0
    %1561 = vmatprep.subr.mxu0 0.0
    %1562 = vmatpush1.msra.mxu0 0.0
    %1563 = vmatprep.subr.mxu0 0.0
    %1564 = vmatpush1.msra.mxu0 0.0
    %1565 = vmatprep.subr.mxu0 0.0
    %1566 = vmatpush1.msra.mxu0 0.0
    %1567 = vmatprep.subr.mxu0 0.0
    %1568 = vmatpush1.msra.mxu0 0.0
    %1569 = vmatprep.mubr.f32.mxu0 0.0
    %1570 = vmatmul.mubr.f32.gmra.mrb[0].mxu0 %v1503
    %v1571 = vpop.f32.mrb[0].mxu0
    %v1572 = vadd.f32 %v1501, %v1571
    %v1573 = vpop.f32.mrb[0].mxu0
    %1574 = vdwg.mxu0
    %v1575 = vmax.f32 %v1572, 0.0
    %s1576 = scalar_lea.vmem [#allocation2], 128
    %v1577 = vld [vmem:[%s1576] sm:$0xff]
    %v1578 = vld [vmem:[%s1576 + $0x8] sm:$0xff]
    %v1579 = vld [vmem:[%s3 + $0x8] sm:$0x1]
    %v1580 = vlaneseq
    %v1581 = vshrl.u32 %v1580, 7
    %v1582 = vsub.s32 0, %v1581
    %v1583 = vrot.slane %v1579, %v1582
    %v1585 = vsel %vm112, %v1575, 0
    %1587 = vmatprep.subr.mxu0 0.0
    %1588 = vmatpush1.msra.mxu0 %v1577
    %1589 = vmatprep.subr.mxu0 0.0
    %1590 = vmatpush1.msra.mxu0 %v1578
    %1591 = vmatprep.subr.mxu0 0.0
    %1592 = vmatpush1.msra.mxu0 0.0
    %1593 = vmatprep.subr.mxu0 0.0
    %1594 = vmatpush1.msra.mxu0 0.0
    %1595 = vmatprep.subr.mxu0 0.0
    %1596 = vmatpush1.msra.mxu0 0.0
    %1597 = vmatprep.subr.mxu0 0.0
    %1598 = vmatpush1.msra.mxu0 0.0
    %1599 = vmatprep.subr.mxu0 0.0
    %1600 = vmatpush1.msra.mxu0 0.0
    %1601 = vmatprep.subr.mxu0 0.0
    %1602 = vmatpush1.msra.mxu0 0.0
    %1603 = vmatprep.subr.mxu0 0.0
    %1604 = vmatpush1.msra.mxu0 0.0
    %1605 = vmatprep.subr.mxu0 0.0
    %1606 = vmatpush1.msra.mxu0 0.0
    %1607 = vmatprep.subr.mxu0 0.0
    %1608 = vmatpush1.msra.mxu0 0.0
    %1609 = vmatprep.subr.mxu0 0.0
    %1610 = vmatpush1.msra.mxu0 0.0
    %1611 = vmatprep.subr.mxu0 0.0
    %1612 = vmatpush1.msra.mxu0 0.0
    %1613 = vmatprep.subr.mxu0 0.0
    %1614 = vmatpush1.msra.mxu0 0.0
    %1615 = vmatprep.subr.mxu0 0.0
    %1616 = vmatpush1.msra.mxu0 0.0
    %1617 = vmatprep.subr.mxu0 0.0
    %1618 = vmatpush1.msra.mxu0 0.0
    %1619 = vmatprep.subr.mxu0 0.0
    %1620 = vmatpush1.msra.mxu0 0.0
    %1621 = vmatprep.subr.mxu0 0.0
    %1622 = vmatpush1.msra.mxu0 0.0
    %1623 = vmatprep.subr.mxu0 0.0
    %1624 = vmatpush1.msra.mxu0 0.0
    %1625 = vmatprep.subr.mxu0 0.0
    %1626 = vmatpush1.msra.mxu0 0.0
    %1627 = vmatprep.subr.mxu0 0.0
    %1628 = vmatpush1.msra.mxu0 0.0
    %1629 = vmatprep.subr.mxu0 0.0
    %1630 = vmatpush1.msra.mxu0 0.0
    %1631 = vmatprep.subr.mxu0 0.0
    %1632 = vmatpush1.msra.mxu0 0.0
    %1633 = vmatprep.subr.mxu0 0.0
    %1634 = vmatpush1.msra.mxu0 0.0
    %1635 = vmatprep.subr.mxu0 0.0
    %1636 = vmatpush1.msra.mxu0 0.0
    %1637 = vmatprep.subr.mxu0 0.0
    %1638 = vmatpush1.msra.mxu0 0.0
    %1639 = vmatprep.subr.mxu0 0.0
    %1640 = vmatpush1.msra.mxu0 0.0
    %1641 = vmatprep.subr.mxu0 0.0
    %1642 = vmatpush1.msra.mxu0 0.0
    %1643 = vmatprep.subr.mxu0 0.0
    %1644 = vmatpush1.msra.mxu0 0.0
    %1645 = vmatprep.subr.mxu0 0.0
    %1646 = vmatpush1.msra.mxu0 0.0
    %1647 = vmatprep.subr.mxu0 0.0
    %1648 = vmatpush1.msra.mxu0 0.0
    %1649 = vmatprep.subr.mxu0 0.0
    %1650 = vmatpush1.msra.mxu0 0.0
    %1651 = vmatprep.mubr.f32.mxu0 0.0
    %1652 = vmatmul.mubr.f32.gmra.mrb[0].mxu0 %v1585
    %v1653 = vpop.f32.mrb[0].mxu0
    %v1654 = vadd.f32 %v1583, %v1653
    %v1655 = vpop.f32.mrb[0].mxu0
    %1656 = vdwg.mxu0
    %v1657 = vmax.f32 %v1654, 0.0
    %s1658 = scalar_lea.vmem [#allocation2], 144
    %v1659 = vld [vmem:[%s1658] sm:$0xff]
    %v1660 = vld [vmem:[%s1658 + $0x8] sm:$0xff]
    %v1661 = vld [vmem:[%s3 + $0x9] sm:$0x1]
    %v1662 = vlaneseq
    %v1663 = vshrl.u32 %v1662, 7
    %v1664 = vsub.s32 0, %v1663
    %v1665 = vrot.slane %v1661, %v1664
    %v1667 = vsel %vm112, %v1657, 0
    %1669 = vmatprep.subr.mxu0 0.0
    %1670 = vmatpush1.msra.mxu0 %v1659
    %1671 = vmatprep.subr.mxu0 0.0
    %1672 = vmatpush1.msra.mxu0 %v1660
    %1673 = vmatprep.subr.mxu0 0.0
    %1674 = vmatpush1.msra.mxu0 0.0
    %1675 = vmatprep.subr.mxu0 0.0
    %1676 = vmatpush1.msra.mxu0 0.0
    %1677 = vmatprep.subr.mxu0 0.0
    %1678 = vmatpush1.msra.mxu0 0.0
    %1679 = vmatprep.subr.mxu0 0.0
    %1680 = vmatpush1.msra.mxu0 0.0
    %1681 = vmatprep.subr.mxu0 0.0
    %1682 = vmatpush1.msra.mxu0 0.0
    %1683 = vmatprep.subr.mxu0 0.0
    %1684 = vmatpush1.msra.mxu0 0.0
    %1685 = vmatprep.subr.mxu0 0.0
    %1686 = vmatpush1.msra.mxu0 0.0
    %1687 = vmatprep.subr.mxu0 0.0
    %1688 = vmatpush1.msra.mxu0 0.0
    %1689 = vmatprep.subr.mxu0 0.0
    %1690 = vmatpush1.msra.mxu0 0.0
    %1691 = vmatprep.subr.mxu0 0.0
    %1692 = vmatpush1.msra.mxu0 0.0
    %1693 = vmatprep.subr.mxu0 0.0
    %1694 = vmatpush1.msra.mxu0 0.0
    %1695 = vmatprep.subr.mxu0 0.0
    %1696 = vmatpush1.msra.mxu0 0.0
    %1697 = vmatprep.subr.mxu0 0.0
    %1698 = vmatpush1.msra.mxu0 0.0
    %1699 = vmatprep.subr.mxu0 0.0
    %1700 = vmatpush1.msra.mxu0 0.0
    %1701 = vmatprep.subr.mxu0 0.0
    %1702 = vmatpush1.msra.mxu0 0.0
    %1703 = vmatprep.subr.mxu0 0.0
    %1704 = vmatpush1.msra.mxu0 0.0
    %1705 = vmatprep.subr.mxu0 0.0
    %1706 = vmatpush1.msra.mxu0 0.0
    %1707 = vmatprep.subr.mxu0 0.0
    %1708 = vmatpush1.msra.mxu0 0.0
    %1709 = vmatprep.subr.mxu0 0.0
    %1710 = vmatpush1.msra.mxu0 0.0
    %1711 = vmatprep.subr.mxu0 0.0
    %1712 = vmatpush1.msra.mxu0 0.0
    %1713 = vmatprep.subr.mxu0 0.0
    %1714 = vmatpush1.msra.mxu0 0.0
    %1715 = vmatprep.subr.mxu0 0.0
    %1716 = vmatpush1.msra.mxu0 0.0
    %1717 = vmatprep.subr.mxu0 0.0
    %1718 = vmatpush1.msra.mxu0 0.0
    %1719 = vmatprep.subr.mxu0 0.0
    %1720 = vmatpush1.msra.mxu0 0.0
    %1721 = vmatprep.subr.mxu0 0.0
    %1722 = vmatpush1.msra.mxu0 0.0
    %1723 = vmatprep.subr.mxu0 0.0
    %1724 = vmatpush1.msra.mxu0 0.0
    %1725 = vmatprep.subr.mxu0 0.0
    %1726 = vmatpush1.msra.mxu0 0.0
    %1727 = vmatprep.subr.mxu0 0.0
    %1728 = vmatpush1.msra.mxu0 0.0
    %1729 = vmatprep.subr.mxu0 0.0
    %1730 = vmatpush1.msra.mxu0 0.0
    %1731 = vmatprep.subr.mxu0 0.0
    %1732 = vmatpush1.msra.mxu0 0.0
    %1733 = vmatprep.mubr.f32.mxu0 0.0
    %1734 = vmatmul.mubr.f32.gmra.mrb[0].mxu0 %v1667
    %v1735 = vpop.f32.mrb[0].mxu0
    %v1736 = vadd.f32 %v1665, %v1735
    %v1737 = vpop.f32.mrb[0].mxu0
    %1738 = vdwg.mxu0
    %v1739 = vmax.f32 %v1736, 0.0
    %v1740 = vld [vmem:[%s3 + $0xa] sm:$0x1]
    %v1741 = vld [vmem:[%s3 + $0xb] sm:$0x1]
    %v1742 = vlaneseq
    %v1743 = vshrl.u32 %v1742, 7
    %v1744 = vsub.s32 0, %v1743
    %v1745 = vrot.slane %v1740, %v1744
    %v1746 = vmul.f32 %v1739, %v1745
    %v1747 = vsel %vm112, %v1746, 0.0
    %1748 = vadd.xlane.f32.xlu0 %v1747
    %v1749 = vpop.xlane.xlu0 %1748
    %v1750 = vlaneseq
    %v1751 = vshrl.u32 %v1750, 7
    %v1752 = vsub.s32 0, %v1751
    %v1753 = vrot.slane %v1741, %v1752
    %v1754 = vadd.f32 %v1749, %v1753
    %vm1755 = vcmask 7168
    %1756 = vst.msk [vmem:[%s4] sm:$0xff] %vm1755, %v1754
    // Predicated region
    $region22: #{tpu_custom_call.1} parent=1 // pred_check
      _
    $region23: #{tpu_custom_call.1} parent=1 // pred_check_branch
      %1758 = sbr.rel (0) target = $region25
    $region24: #{tpu_custom_call.1} parent=1 // pred_region
      _
    $region25: #{tpu_custom_call.1} parent=1 // pred_fallthru
      _
    // Predicated region
    $region26: #{tpu_custom_call.1} parent=1 // pred_check
      _
    $region27: #{tpu_custom_call.1} parent=1 // pred_check_branch
      %1760 = sbr.rel (0) target = $region29
    $region28: #{tpu_custom_call.1} parent=1 // pred_region
      _
    $region29: #{tpu_custom_call.1} parent=1 // pred_fallthru
      _
    %1761 = vsyncpa [#allocation3], 1

</llo_original>
